<compile_context>
chip_gen: v6e
topology: v6e:2x2x1
jax: 0.10.0
libtpu: 0.0.40
codegen_flags: <defaults>
</compile_context>

<pallas_src>
import jax
import jax.numpy as jnp
from jax.experimental import pallas as pl
from jax.experimental.pallas import tpu as pltpu


# -------------------------------------------------------------------------------------------------
# Kernel
# -------------------------------------------------------------------------------------------------
def make_lstm_kernel(num_layers, seq_len, batch_padded, hidden_dim):
    H = hidden_dim
    T = seq_len
    Bp = batch_padded  # multiple of 16 (bf16 sublane packing)

    def kernel(*refs):
        # refs = [x, (w_ih_T, w_hh_T, b) * L, w_fc_T, b_fc, out, pre_scratch[, seq_scratch]]
        x_ref = refs[0]                                # [T*Bp, D]   bf16
        layer_refs = refs[1:1 + 3 * num_layers]
        w_fc_ref = refs[1 + 3 * num_layers]            # [H, O]      bf16
        b_fc_ref = refs[2 + 3 * num_layers]            # [1, O]      f32
        out_ref = refs[3 + 3 * num_layers]             # [Bp, O]     f32
        pre_ref = refs[4 + 3 * num_layers]             # [T*Bp, 4H]  f32 scratch
        seq_ref = refs[5 + 3 * num_layers] if num_layers > 1 else None  # [T*Bp, H] bf16 scratch

        h = None
        for l in range(num_layers):                    # static loop over layers
            w_ih = layer_refs[3 * l][...]              # [D_in, 4H] bf16
            w_hh = layer_refs[3 * l + 1][...]          # [H, 4H]    bf16
            b = layer_refs[3 * l + 2][...]             # [1, 4H]    f32

            # Hoisted input projection for every timestep of this layer.
            # Result goes to a VMEM scratch ref so only one [Bp, 4H] slice is live per step.
            seq_in = x_ref[...] if l == 0 else seq_ref[...]          # bf16
            pre_ref[...] = jnp.dot(seq_in, w_ih,
                                   preferred_element_type=jnp.float32) + b

            h = jnp.zeros((Bp, H), jnp.float32)
            c = jnp.zeros((Bp, H), jnp.float32)
            write_seq = (l + 1 < num_layers)

            # Serial recurrence: only h @ W_hh (+ elementwise gate math) per step.
            for t in range(T):
                gates = pre_ref[t * Bp:(t + 1) * Bp, :] + jnp.dot(
                    h.astype(w_hh.dtype), w_hh,
                    preferred_element_type=jnp.float32)              # [Bp, 4H] f32
                # Gate column order is (i, f, o, g):
                sig = jax.nn.sigmoid(gates[:, 0:3 * H])              # i, f, o
                g_g = jnp.tanh(gates[:, 3 * H:4 * H])                # g
                i_g = sig[:, 0:H]
                f_g = sig[:, H:2 * H]
                o_g = sig[:, 2 * H:3 * H]
                c = f_g * c + i_g * g_g
                h = o_g * jnp.tanh(c)
                if write_seq:
                    # bf16, sublane-packed-aligned store (Bp % 16 == 0); feeds next layer's matmul.
                    seq_ref[t * Bp:(t + 1) * Bp, :] = h.astype(seq_ref.dtype)

        # fc on the last timestep's hidden state of the top layer (bf16 MXU, f32 accumulate).
        out_ref[...] = (jnp.dot(h.astype(w_fc_ref.dtype), w_fc_ref[...],
                                preferred_element_type=jnp.float32)
                        + b_fc_ref[...])

    return kernel


# -------------------------------------------------------------------------------------------------
# Wrapper
# -------------------------------------------------------------------------------------------------
def lstm_forward(x, kparams, num_layers, hidden_dim, output_dim):
    """x: [B, T, D] (batch_first, like PyTorch). Returns [B, output_dim] in f32."""
    B, T, D = x.shape
    H = hidden_dim
    Bp = ((B + 15) // 16) * 16                      # pad batch to bf16 sublane-packed multiple
    x_p = jnp.pad(x, ((0, Bp - B), (0, 0), (0, 0)))
    x_tm = jnp.transpose(x_p, (1, 0, 2)).reshape(T * Bp, D).astype(jnp.bfloat16)

    inputs = [x_tm]
    for (w_ih_t, w_hh_t, b) in kparams["layers"]:
        inputs += [w_ih_t, w_hh_t, b]               # bf16, bf16, f32
    inputs += [kparams["w_fc_t"], kparams["b_fc"]]  # bf16, f32

    scratch = [pltpu.VMEM((T * Bp, 4 * H), jnp.float32)]          # pre-activations
    if num_layers > 1:
        scratch.append(pltpu.VMEM((T * Bp, H), jnp.bfloat16))     # inter-layer hidden sequence

    # Rough VMEM budget: inputs + output + scratch, x2 headroom, floor at 16 MiB.
    raw = (x_tm.size * 2
           + sum(a.size * a.dtype.itemsize for a in inputs[1:])
           + Bp * output_dim * 4
           + T * Bp * 4 * H * 4
           + (T * Bp * H * 2 if num_layers > 1 else 0))
    vmem_limit = min(100 * 1024 * 1024, max(2 * raw + (2 << 20), 16 * 1024 * 1024))

    vmem = pltpu.MemorySpace.VMEM
    kernel = make_lstm_kernel(num_layers, T, Bp, H)
    out = pl.pallas_call(
        kernel,
        out_shape=jax.ShapeDtypeStruct((Bp, output_dim), jnp.float32),
        in_specs=[pl.BlockSpec(memory_space=vmem)] * len(inputs),
        out_specs=pl.BlockSpec(memory_space=vmem),
        scratch_shapes=scratch,
        compiler_params=pltpu.CompilerParams(vmem_limit_bytes=int(vmem_limit)),
    )(*inputs)
    return out[:B]


# -------------------------------------------------------------------------------------------------
# Parameters (PyTorch layout) and kernel-layout preparation
# -------------------------------------------------------------------------------------------------
def init_torch_params(key, input_dim, hidden_dim, num_layers, output_dim):
    """Deterministic synthetic parameters in PyTorch nn.LSTM / nn.Linear shapes,
    gate row order (i, f, g, o) as in PyTorch."""
    H = hidden_dim
    layers = []
    for l in range(num_layers):
        d_in = input_dim if l == 0 else H
        key, k1, k2, k3, k4 = jax.random.split(key, 5)
        w_ih = 0.1 * jax.random.normal(k1, (4 * H, d_in), jnp.float32)  # weight_ih_l{l}
        w_hh = 0.1 * jax.random.normal(k2, (4 * H, H), jnp.float32)     # weight_hh_l{l}
        b_ih = 0.1 * jax.random.normal(k3, (4 * H,), jnp.float32)
        b_hh = 0.1 * jax.random.normal(k4, (4 * H,), jnp.float32)
        layers.append((w_ih, w_hh, b_ih, b_hh))
    key, k5, k6 = jax.random.split(key, 3)
    w_fc = 0.1 * jax.random.normal(k5, (output_dim, H), jnp.float32)    # fc.weight
    b_fc = 0.1 * jax.random.normal(k6, (output_dim,), jnp.float32)      # fc.bias
    return {"layers": layers, "w_fc": w_fc, "b_fc": b_fc}


def _reorder_gates_ifog(w, H):
    """PyTorch gate row order (i, f, g, o) -> kernel order (i, f, o, g), along axis 0."""
    return jnp.concatenate([w[0:H], w[H:2 * H], w[3 * H:4 * H], w[2 * H:3 * H]], axis=0)


def prepare_kernel_params(tp, hidden_dim):
    """Transpose, combine biases, reorder gates to (i, f, o, g), cast matmul weights to bf16."""
    H = hidden_dim
    layers = []
    for (w_ih, w_hh, b_ih, b_hh) in tp["layers"]:
        w_ih_t = _reorder_gates_ifog(w_ih, H).T.astype(jnp.bfloat16)   # [D_in, 4H]
        w_hh_t = _reorder_gates_ifog(w_hh, H).T.astype(jnp.bfloat16)   # [H, 4H]
        b = _reorder_gates_ifog(b_ih + b_hh, H)[None, :]               # [1, 4H] f32
        layers.append((w_ih_t, w_hh_t, b))
    return {"layers": layers,
            "w_fc_t": tp["w_fc"].T.astype(jnp.bfloat16),               # [H, O]
            "b_fc": tp["b_fc"][None, :]}                               # [1, O] f32


# -------------------------------------------------------------------------------------------------
# Pure-JAX references
# -------------------------------------------------------------------------------------------------
def lstm_reference(x, tp, num_layers, hidden_dim, matmul_dtype):
    """PyTorch-semantics LSTM + fc(last timestep). matmul_dtype=bf16 replicates the kernel's
    MXU numerics (f32 accumulation); matmul_dtype=f32 is the true-precision reference."""
    B, T, _ = x.shape
    H = hidden_dim

    def mm(a, w_t):
        return jnp.dot(a.astype(matmul_dtype), w_t.astype(matmul_dtype),
                       preferred_element_type=jnp.float32)

    seq = x
    h = None
    for l in range(num_layers):
        w_ih, w_hh, b_ih, b_hh = tp["layers"][l]
        w_ih_t, w_hh_t = w_ih.T, w_hh.T
        b = (b_ih + b_hh)[None, :]
        h = jnp.zeros((B, H), jnp.float32)
        c = jnp.zeros((B, H), jnp.float32)
        outs = []
        for t in range(T):
            g = mm(seq[:, t, :], w_ih_t) + b + mm(h, w_hh_t)   # PyTorch order (i, f, g, o)
            i_g = jax.nn.sigmoid(g[:, 0:H])
            f_g = jax.nn.sigmoid(g[:, H:2 * H])
            g_g = jnp.tanh(g[:, 2 * H:3 * H])
            o_g = jax.nn.sigmoid(g[:, 3 * H:4 * H])
            c = f_g * c + i_g * g_g
            h = o_g * jnp.tanh(c)
            outs.append(h)
        seq = jnp.stack(outs, axis=1)
    return mm(h, tp["w_fc"].T) + tp["b_fc"][None, :]


# -------------------------------------------------------------------------------------------------
if __name__ == "__main__":
    # Small shapes consistent with the module's forward: x [B, T, D] -> out [B, O].
    B, T, D, H, L, O = 4, 8, 16, 32, 2, 8

    key = jax.random.PRNGKey(0)
    kx, kp = jax.random.split(key)
    x = jax.random.normal(kx, (B, T, D), jnp.float32)

    tparams = init_torch_params(kp, D, H, L, O)
    kparams = prepare_kernel_params(tparams, H)

    out = lstm_forward(x, kparams, L, H, O)
    out = jax.block_until_ready(out)
    assert out.shape == (B, O)

    # Tight check against a reference with matching bf16-matmul numerics (validates structure,
    # gate reordering, recurrence), plus a loose check against true f32 PyTorch semantics.
    ref_bf16 = lstm_reference(x, tparams, L, H, jnp.bfloat16)
    ref_f32 = lstm_reference(x, tparams, L, H, jnp.float32)
    assert jnp.allclose(out, ref_bf16, atol=1e-2, rtol=1e-2), "kernel vs bf16 reference mismatch"
    assert jnp.allclose(out, ref_f32, atol=5e-2, rtol=5e-2), "kernel vs f32 reference mismatch"

    print("KERNEL_OK")
</pallas_src>

<mosaic_0001>
module attributes {stable_mosaic.version = 11 : i64} {
  func.func @kernel(%arg0: memref<128x16xbf16, #tpu.memory_space<vmem>>, %arg1: memref<16x128xbf16, #tpu.memory_space<vmem>>, %arg2: memref<32x128xbf16, #tpu.memory_space<vmem>>, %arg3: memref<1x128xf32, #tpu.memory_space<vmem>>, %arg4: memref<32x128xbf16, #tpu.memory_space<vmem>>, %arg5: memref<32x128xbf16, #tpu.memory_space<vmem>>, %arg6: memref<1x128xf32, #tpu.memory_space<vmem>>, %arg7: memref<32x8xbf16, #tpu.memory_space<vmem>>, %arg8: memref<1x8xf32, #tpu.memory_space<vmem>>, %arg9: memref<16x8xf32, #tpu.memory_space<vmem>>, %arg10: memref<128x128xf32, #tpu.memory_space<vmem>>, %arg11: memref<128x32xbf16, #tpu.memory_space<vmem>>) attributes {dimension_semantics = [], scalar_prefetch = 0 : i64, scratch_operands = 2 : i64, tpu.core_type = #tpu.core_type<tc>} {
    %c0 = arith.constant 0 : index
    %c0_0 = arith.constant 0 : index
    %0 = vector.load %arg1[%c0, %c0_0] : memref<16x128xbf16, #tpu.memory_space<vmem>>, vector<16x128xbf16>
    %c0_1 = arith.constant 0 : index
    %c0_2 = arith.constant 0 : index
    %1 = vector.load %arg2[%c0_1, %c0_2] : memref<32x128xbf16, #tpu.memory_space<vmem>>, vector<32x128xbf16>
    %c0_3 = arith.constant 0 : index
    %c0_4 = arith.constant 0 : index
    %2 = vector.load %arg3[%c0_3, %c0_4] : memref<1x128xf32, #tpu.memory_space<vmem>>, vector<1x128xf32>
    %c0_5 = arith.constant 0 : index
    %c0_6 = arith.constant 0 : index
    %3 = vector.load %arg0[%c0_5, %c0_6] : memref<128x16xbf16, #tpu.memory_space<vmem>>, vector<128x16xbf16>
    %cst = arith.constant dense<0.000000e+00> : vector<128x128xf32>
    %4 = tpu.matmul %3, %0, %cst {dimension_numbers = #tpu.dot_dimension_numbers<[1], [0], [0], [1], [0, 0, 1, 1], [], []>} : vector<128x16xbf16>, vector<16x128xbf16>, vector<128x128xf32> -> vector<128x128xf32>
    %5 = vector.broadcast %2 : vector<1x128xf32> to vector<128x128xf32>
    %6 = arith.addf %4, %5 : vector<128x128xf32>
    %c0_7 = arith.constant 0 : index
    %c0_8 = arith.constant 0 : index
    %7 = vector.load %arg10[%c0_7, %c0_8] : memref<128x128xf32, #tpu.memory_space<vmem>>, vector<128x128xf32>
    tpu.vector_store %arg10[%c0_7, %c0_8], %6 {strides = array<i32>} : memref<128x128xf32, #tpu.memory_space<vmem>>, vector<128x128xf32>,
    %cst_9 = arith.constant 0.000000e+00 : f32
    %8 = vector.broadcast %cst_9 : f32 to vector<16x32xf32>
    %cst_10 = arith.constant 0.000000e+00 : f32
    %9 = vector.broadcast %cst_10 : f32 to vector<16x32xf32>
    %c0_11 = arith.constant 0 : index
    %c0_12 = arith.constant 0 : index
    %10 = vector.load %arg10[%c0_11, %c0_12] : memref<128x128xf32, #tpu.memory_space<vmem>>, vector<16x128xf32>
    %11 = arith.truncf %8 : vector<16x32xf32> to vector<16x32xbf16>
    %cst_13 = arith.constant dense<0.000000e+00> : vector<16x128xf32>
    %12 = tpu.matmul %11, %1, %cst_13 {dimension_numbers = #tpu.dot_dimension_numbers<[1], [0], [0], [1], [0, 0, 1, 1], [], []>} : vector<16x32xbf16>, vector<32x128xbf16>, vector<16x128xf32> -> vector<16x128xf32>
    %13 = arith.addf %10, %12 : vector<16x128xf32>
    %14 = vector.extract_strided_slice %13 {offsets = [0, 0], sizes = [16, 96], strides = [1, 1]} : vector<16x128xf32> to vector<16x96xf32>
    %15 = arith.negf %14 : vector<16x96xf32>
    %16 = math.exp %15 : vector<16x96xf32>
    %cst_14 = arith.constant 1.000000e+00 : f32
    %17 = vector.broadcast %cst_14 : f32 to vector<16x96xf32>
    %18 = arith.addf %17, %16 : vector<16x96xf32>
    %19 = arith.divf %17, %18 : vector<16x96xf32>
    %20 = vector.extract_strided_slice %13 {offsets = [0, 96], sizes = [16, 32], strides = [1, 1]} : vector<16x128xf32> to vector<16x32xf32>
    %21 = math.tanh %20 : vector<16x32xf32>
    %22 = vector.extract_strided_slice %19 {offsets = [0, 0], sizes = [16, 32], strides = [1, 1]} : vector<16x96xf32> to vector<16x32xf32>
    %23 = vector.extract_strided_slice %19 {offsets = [0, 32], sizes = [16, 32], strides = [1, 1]} : vector<16x96xf32> to vector<16x32xf32>
    %24 = vector.extract_strided_slice %19 {offsets = [0, 64], sizes = [16, 32], strides = [1, 1]} : vector<16x96xf32> to vector<16x32xf32>
    %25 = arith.mulf %23, %9 : vector<16x32xf32>
    %26 = arith.mulf %22, %21 : vector<16x32xf32>
    %27 = arith.addf %25, %26 : vector<16x32xf32>
    %28 = math.tanh %27 : vector<16x32xf32>
    %29 = arith.mulf %24, %28 : vector<16x32xf32>
    %30 = arith.truncf %29 : vector<16x32xf32> to vector<16x32xbf16>
    %c0_15 = arith.constant 0 : index
    %c0_16 = arith.constant 0 : index
    %31 = vector.load %arg11[%c0_15, %c0_16] : memref<128x32xbf16, #tpu.memory_space<vmem>>, vector<16x32xbf16>
    tpu.vector_store %arg11[%c0_15, %c0_16], %30 {strides = array<i32>} : memref<128x32xbf16, #tpu.memory_space<vmem>>, vector<16x32xbf16>,
    %c16 = arith.constant 16 : index
    %c0_17 = arith.constant 0 : index
    %32 = vector.load %arg10[%c16, %c0_17] : memref<128x128xf32, #tpu.memory_space<vmem>>, vector<16x128xf32>
    %33 = arith.truncf %29 : vector<16x32xf32> to vector<16x32xbf16>
    %cst_18 = arith.constant dense<0.000000e+00> : vector<16x128xf32>
    %34 = tpu.matmul %33, %1, %cst_18 {dimension_numbers = #tpu.dot_dimension_numbers<[1], [0], [0], [1], [0, 0, 1, 1], [], []>} : vector<16x32xbf16>, vector<32x128xbf16>, vector<16x128xf32> -> vector<16x128xf32>
    %35 = arith.addf %32, %34 : vector<16x128xf32>
    %36 = vector.extract_strided_slice %35 {offsets = [0, 0], sizes = [16, 96], strides = [1, 1]} : vector<16x128xf32> to vector<16x96xf32>
    %37 = arith.negf %36 : vector<16x96xf32>
    %38 = math.exp %37 : vector<16x96xf32>
    %cst_19 = arith.constant 1.000000e+00 : f32
    %39 = vector.broadcast %cst_19 : f32 to vector<16x96xf32>
    %40 = arith.addf %39, %38 : vector<16x96xf32>
    %41 = arith.divf %39, %40 : vector<16x96xf32>
    %42 = vector.extract_strided_slice %35 {offsets = [0, 96], sizes = [16, 32], strides = [1, 1]} : vector<16x128xf32> to vector<16x32xf32>
    %43 = math.tanh %42 : vector<16x32xf32>
    %44 = vector.extract_strided_slice %41 {offsets = [0, 0], sizes = [16, 32], strides = [1, 1]} : vector<16x96xf32> to vector<16x32xf32>
    %45 = vector.extract_strided_slice %41 {offsets = [0, 32], sizes = [16, 32], strides = [1, 1]} : vector<16x96xf32> to vector<16x32xf32>
    %46 = vector.extract_strided_slice %41 {offsets = [0, 64], sizes = [16, 32], strides = [1, 1]} : vector<16x96xf32> to vector<16x32xf32>
    %47 = arith.mulf %45, %27 : vector<16x32xf32>
    %48 = arith.mulf %44, %43 : vector<16x32xf32>
    %49 = arith.addf %47, %48 : vector<16x32xf32>
    %50 = math.tanh %49 : vector<16x32xf32>
    %51 = arith.mulf %46, %50 : vector<16x32xf32>
    %52 = arith.truncf %51 : vector<16x32xf32> to vector<16x32xbf16>
    %c16_20 = arith.constant 16 : index
    %c0_21 = arith.constant 0 : index
    %53 = vector.load %arg11[%c16_20, %c0_21] : memref<128x32xbf16, #tpu.memory_space<vmem>>, vector<16x32xbf16>
    tpu.vector_store %arg11[%c16_20, %c0_21], %52 {strides = array<i32>} : memref<128x32xbf16, #tpu.memory_space<vmem>>, vector<16x32xbf16>,
    %c32 = arith.constant 32 : index
    %c0_22 = arith.constant 0 : index
    %54 = vector.load %arg10[%c32, %c0_22] : memref<128x128xf32, #tpu.memory_space<vmem>>, vector<16x128xf32>
    %55 = arith.truncf %51 : vector<16x32xf32> to vector<16x32xbf16>
    %cst_23 = arith.constant dense<0.000000e+00> : vector<16x128xf32>
    %56 = tpu.matmul %55, %1, %cst_23 {dimension_numbers = #tpu.dot_dimension_numbers<[1], [0], [0], [1], [0, 0, 1, 1], [], []>} : vector<16x32xbf16>, vector<32x128xbf16>, vector<16x128xf32> -> vector<16x128xf32>
    %57 = arith.addf %54, %56 : vector<16x128xf32>
    %58 = vector.extract_strided_slice %57 {offsets = [0, 0], sizes = [16, 96], strides = [1, 1]} : vector<16x128xf32> to vector<16x96xf32>
    %59 = arith.negf %58 : vector<16x96xf32>
    %60 = math.exp %59 : vector<16x96xf32>
    %cst_24 = arith.constant 1.000000e+00 : f32
    %61 = vector.broadcast %cst_24 : f32 to vector<16x96xf32>
    %62 = arith.addf %61, %60 : vector<16x96xf32>
    %63 = arith.divf %61, %62 : vector<16x96xf32>
    %64 = vector.extract_strided_slice %57 {offsets = [0, 96], sizes = [16, 32], strides = [1, 1]} : vector<16x128xf32> to vector<16x32xf32>
    %65 = math.tanh %64 : vector<16x32xf32>
    %66 = vector.extract_strided_slice %63 {offsets = [0, 0], sizes = [16, 32], strides = [1, 1]} : vector<16x96xf32> to vector<16x32xf32>
    %67 = vector.extract_strided_slice %63 {offsets = [0, 32], sizes = [16, 32], strides = [1, 1]} : vector<16x96xf32> to vector<16x32xf32>
    %68 = vector.extract_strided_slice %63 {offsets = [0, 64], sizes = [16, 32], strides = [1, 1]} : vector<16x96xf32> to vector<16x32xf32>
    %69 = arith.mulf %67, %49 : vector<16x32xf32>
    %70 = arith.mulf %66, %65 : vector<16x32xf32>
    %71 = arith.addf %69, %70 : vector<16x32xf32>
    %72 = math.tanh %71 : vector<16x32xf32>
    %73 = arith.mulf %68, %72 : vector<16x32xf32>
    %74 = arith.truncf %73 : vector<16x32xf32> to vector<16x32xbf16>
    %c32_25 = arith.constant 32 : index
    %c0_26 = arith.constant 0 : index
    %75 = vector.load %arg11[%c32_25, %c0_26] : memref<128x32xbf16, #tpu.memory_space<vmem>>, vector<16x32xbf16>
    tpu.vector_store %arg11[%c32_25, %c0_26], %74 {strides = array<i32>} : memref<128x32xbf16, #tpu.memory_space<vmem>>, vector<16x32xbf16>,
    %c48 = arith.constant 48 : index
    %c0_27 = arith.constant 0 : index
    %76 = vector.load %arg10[%c48, %c0_27] : memref<128x128xf32, #tpu.memory_space<vmem>>, vector<16x128xf32>
    %77 = arith.truncf %73 : vector<16x32xf32> to vector<16x32xbf16>
    %cst_28 = arith.constant dense<0.000000e+00> : vector<16x128xf32>
    %78 = tpu.matmul %77, %1, %cst_28 {dimension_numbers = #tpu.dot_dimension_numbers<[1], [0], [0], [1], [0, 0, 1, 1], [], []>} : vector<16x32xbf16>, vector<32x128xbf16>, vector<16x128xf32> -> vector<16x128xf32>
    %79 = arith.addf %76, %78 : vector<16x128xf32>
    %80 = vector.extract_strided_slice %79 {offsets = [0, 0], sizes = [16, 96], strides = [1, 1]} : vector<16x128xf32> to vector<16x96xf32>
    %81 = arith.negf %80 : vector<16x96xf32>
    %82 = math.exp %81 : vector<16x96xf32>
    %cst_29 = arith.constant 1.000000e+00 : f32
    %83 = vector.broadcast %cst_29 : f32 to vector<16x96xf32>
    %84 = arith.addf %83, %82 : vector<16x96xf32>
    %85 = arith.divf %83, %84 : vector<16x96xf32>
    %86 = vector.extract_strided_slice %79 {offsets = [0, 96], sizes = [16, 32], strides = [1, 1]} : vector<16x128xf32> to vector<16x32xf32>
    %87 = math.tanh %86 : vector<16x32xf32>
    %88 = vector.extract_strided_slice %85 {offsets = [0, 0], sizes = [16, 32], strides = [1, 1]} : vector<16x96xf32> to vector<16x32xf32>
    %89 = vector.extract_strided_slice %85 {offsets = [0, 32], sizes = [16, 32], strides = [1, 1]} : vector<16x96xf32> to vector<16x32xf32>
    %90 = vector.extract_strided_slice %85 {offsets = [0, 64], sizes = [16, 32], strides = [1, 1]} : vector<16x96xf32> to vector<16x32xf32>
    %91 = arith.mulf %89, %71 : vector<16x32xf32>
    %92 = arith.mulf %88, %87 : vector<16x32xf32>
    %93 = arith.addf %91, %92 : vector<16x32xf32>
    %94 = math.tanh %93 : vector<16x32xf32>
    %95 = arith.mulf %90, %94 : vector<16x32xf32>
    %96 = arith.truncf %95 : vector<16x32xf32> to vector<16x32xbf16>
    %c48_30 = arith.constant 48 : index
    %c0_31 = arith.constant 0 : index
    %97 = vector.load %arg11[%c48_30, %c0_31] : memref<128x32xbf16, #tpu.memory_space<vmem>>, vector<16x32xbf16>
    tpu.vector_store %arg11[%c48_30, %c0_31], %96 {strides = array<i32>} : memref<128x32xbf16, #tpu.memory_space<vmem>>, vector<16x32xbf16>,
    %c64 = arith.constant 64 : index
    %c0_32 = arith.constant 0 : index
    %98 = vector.load %arg10[%c64, %c0_32] : memref<128x128xf32, #tpu.memory_space<vmem>>, vector<16x128xf32>
    %99 = arith.truncf %95 : vector<16x32xf32> to vector<16x32xbf16>
    %cst_33 = arith.constant dense<0.000000e+00> : vector<16x128xf32>
    %100 = tpu.matmul %99, %1, %cst_33 {dimension_numbers = #tpu.dot_dimension_numbers<[1], [0], [0], [1], [0, 0, 1, 1], [], []>} : vector<16x32xbf16>, vector<32x128xbf16>, vector<16x128xf32> -> vector<16x128xf32>
    %101 = arith.addf %98, %100 : vector<16x128xf32>
    %102 = vector.extract_strided_slice %101 {offsets = [0, 0], sizes = [16, 96], strides = [1, 1]} : vector<16x128xf32> to vector<16x96xf32>
    %103 = arith.negf %102 : vector<16x96xf32>
    %104 = math.exp %103 : vector<16x96xf32>
    %cst_34 = arith.constant 1.000000e+00 : f32
    %105 = vector.broadcast %cst_34 : f32 to vector<16x96xf32>
    %106 = arith.addf %105, %104 : vector<16x96xf32>
    %107 = arith.divf %105, %106 : vector<16x96xf32>
    %108 = vector.extract_strided_slice %101 {offsets = [0, 96], sizes = [16, 32], strides = [1, 1]} : vector<16x128xf32> to vector<16x32xf32>
    %109 = math.tanh %108 : vector<16x32xf32>
    %110 = vector.extract_strided_slice %107 {offsets = [0, 0], sizes = [16, 32], strides = [1, 1]} : vector<16x96xf32> to vector<16x32xf32>
    %111 = vector.extract_strided_slice %107 {offsets = [0, 32], sizes = [16, 32], strides = [1, 1]} : vector<16x96xf32> to vector<16x32xf32>
    %112 = vector.extract_strided_slice %107 {offsets = [0, 64], sizes = [16, 32], strides = [1, 1]} : vector<16x96xf32> to vector<16x32xf32>
    %113 = arith.mulf %111, %93 : vector<16x32xf32>
    %114 = arith.mulf %110, %109 : vector<16x32xf32>
    %115 = arith.addf %113, %114 : vector<16x32xf32>
    %116 = math.tanh %115 : vector<16x32xf32>
    %117 = arith.mulf %112, %116 : vector<16x32xf32>
    %118 = arith.truncf %117 : vector<16x32xf32> to vector<16x32xbf16>
    %c64_35 = arith.constant 64 : index
    %c0_36 = arith.constant 0 : index
    %119 = vector.load %arg11[%c64_35, %c0_36] : memref<128x32xbf16, #tpu.memory_space<vmem>>, vector<16x32xbf16>
    tpu.vector_store %arg11[%c64_35, %c0_36], %118 {strides = array<i32>} : memref<128x32xbf16, #tpu.memory_space<vmem>>, vector<16x32xbf16>,
    %c80 = arith.constant 80 : index
    %c0_37 = arith.constant 0 : index
    %120 = vector.load %arg10[%c80, %c0_37] : memref<128x128xf32, #tpu.memory_space<vmem>>, vector<16x128xf32>
    %121 = arith.truncf %117 : vector<16x32xf32> to vector<16x32xbf16>
    %cst_38 = arith.constant dense<0.000000e+00> : vector<16x128xf32>
    %122 = tpu.matmul %121, %1, %cst_38 {dimension_numbers = #tpu.dot_dimension_numbers<[1], [0], [0], [1], [0, 0, 1, 1], [], []>} : vector<16x32xbf16>, vector<32x128xbf16>, vector<16x128xf32> -> vector<16x128xf32>
    %123 = arith.addf %120, %122 : vector<16x128xf32>
    %124 = vector.extract_strided_slice %123 {offsets = [0, 0], sizes = [16, 96], strides = [1, 1]} : vector<16x128xf32> to vector<16x96xf32>
    %125 = arith.negf %124 : vector<16x96xf32>
    %126 = math.exp %125 : vector<16x96xf32>
    %cst_39 = arith.constant 1.000000e+00 : f32
    %127 = vector.broadcast %cst_39 : f32 to vector<16x96xf32>
    %128 = arith.addf %127, %126 : vector<16x96xf32>
    %129 = arith.divf %127, %128 : vector<16x96xf32>
    %130 = vector.extract_strided_slice %123 {offsets = [0, 96], sizes = [16, 32], strides = [1, 1]} : vector<16x128xf32> to vector<16x32xf32>
    %131 = math.tanh %130 : vector<16x32xf32>
    %132 = vector.extract_strided_slice %129 {offsets = [0, 0], sizes = [16, 32], strides = [1, 1]} : vector<16x96xf32> to vector<16x32xf32>
    %133 = vector.extract_strided_slice %129 {offsets = [0, 32], sizes = [16, 32], strides = [1, 1]} : vector<16x96xf32> to vector<16x32xf32>
    %134 = vector.extract_strided_slice %129 {offsets = [0, 64], sizes = [16, 32], strides = [1, 1]} : vector<16x96xf32> to vector<16x32xf32>
    %135 = arith.mulf %133, %115 : vector<16x32xf32>
    %136 = arith.mulf %132, %131 : vector<16x32xf32>
    %137 = arith.addf %135, %136 : vector<16x32xf32>
    %138 = math.tanh %137 : vector<16x32xf32>
    %139 = arith.mulf %134, %138 : vector<16x32xf32>
    %140 = arith.truncf %139 : vector<16x32xf32> to vector<16x32xbf16>
    %c80_40 = arith.constant 80 : index
    %c0_41 = arith.constant 0 : index
    %141 = vector.load %arg11[%c80_40, %c0_41] : memref<128x32xbf16, #tpu.memory_space<vmem>>, vector<16x32xbf16>
    tpu.vector_store %arg11[%c80_40, %c0_41], %140 {strides = array<i32>} : memref<128x32xbf16, #tpu.memory_space<vmem>>, vector<16x32xbf16>,
    %c96 = arith.constant 96 : index
    %c0_42 = arith.constant 0 : index
    %142 = vector.load %arg10[%c96, %c0_42] : memref<128x128xf32, #tpu.memory_space<vmem>>, vector<16x128xf32>
    %143 = arith.truncf %139 : vector<16x32xf32> to vector<16x32xbf16>
    %cst_43 = arith.constant dense<0.000000e+00> : vector<16x128xf32>
    %144 = tpu.matmul %143, %1, %cst_43 {dimension_numbers = #tpu.dot_dimension_numbers<[1], [0], [0], [1], [0, 0, 1, 1], [], []>} : vector<16x32xbf16>, vector<32x128xbf16>, vector<16x128xf32> -> vector<16x128xf32>
    %145 = arith.addf %142, %144 : vector<16x128xf32>
    %146 = vector.extract_strided_slice %145 {offsets = [0, 0], sizes = [16, 96], strides = [1, 1]} : vector<16x128xf32> to vector<16x96xf32>
    %147 = arith.negf %146 : vector<16x96xf32>
    %148 = math.exp %147 : vector<16x96xf32>
    %cst_44 = arith.constant 1.000000e+00 : f32
    %149 = vector.broadcast %cst_44 : f32 to vector<16x96xf32>
    %150 = arith.addf %149, %148 : vector<16x96xf32>
    %151 = arith.divf %149, %150 : vector<16x96xf32>
    %152 = vector.extract_strided_slice %145 {offsets = [0, 96], sizes = [16, 32], strides = [1, 1]} : vector<16x128xf32> to vector<16x32xf32>
    %153 = math.tanh %152 : vector<16x32xf32>
    %154 = vector.extract_strided_slice %151 {offsets = [0, 0], sizes = [16, 32], strides = [1, 1]} : vector<16x96xf32> to vector<16x32xf32>
    %155 = vector.extract_strided_slice %151 {offsets = [0, 32], sizes = [16, 32], strides = [1, 1]} : vector<16x96xf32> to vector<16x32xf32>
    %156 = vector.extract_strided_slice %151 {offsets = [0, 64], sizes = [16, 32], strides = [1, 1]} : vector<16x96xf32> to vector<16x32xf32>
    %157 = arith.mulf %155, %137 : vector<16x32xf32>
    %158 = arith.mulf %154, %153 : vector<16x32xf32>
    %159 = arith.addf %157, %158 : vector<16x32xf32>
    %160 = math.tanh %159 : vector<16x32xf32>
    %161 = arith.mulf %156, %160 : vector<16x32xf32>
    %162 = arith.truncf %161 : vector<16x32xf32> to vector<16x32xbf16>
    %c96_45 = arith.constant 96 : index
    %c0_46 = arith.constant 0 : index
    %163 = vector.load %arg11[%c96_45, %c0_46] : memref<128x32xbf16, #tpu.memory_space<vmem>>, vector<16x32xbf16>
    tpu.vector_store %arg11[%c96_45, %c0_46], %162 {strides = array<i32>} : memref<128x32xbf16, #tpu.memory_space<vmem>>, vector<16x32xbf16>,
    %c112 = arith.constant 112 : index
    %c0_47 = arith.constant 0 : index
    %164 = vector.load %arg10[%c112, %c0_47] : memref<128x128xf32, #tpu.memory_space<vmem>>, vector<16x128xf32>
    %165 = arith.truncf %161 : vector<16x32xf32> to vector<16x32xbf16>
    %cst_48 = arith.constant dense<0.000000e+00> : vector<16x128xf32>
    %166 = tpu.matmul %165, %1, %cst_48 {dimension_numbers = #tpu.dot_dimension_numbers<[1], [0], [0], [1], [0, 0, 1, 1], [], []>} : vector<16x32xbf16>, vector<32x128xbf16>, vector<16x128xf32> -> vector<16x128xf32>
    %167 = arith.addf %164, %166 : vector<16x128xf32>
    %168 = vector.extract_strided_slice %167 {offsets = [0, 0], sizes = [16, 96], strides = [1, 1]} : vector<16x128xf32> to vector<16x96xf32>
    %169 = arith.negf %168 : vector<16x96xf32>
    %170 = math.exp %169 : vector<16x96xf32>
    %cst_49 = arith.constant 1.000000e+00 : f32
    %171 = vector.broadcast %cst_49 : f32 to vector<16x96xf32>
    %172 = arith.addf %171, %170 : vector<16x96xf32>
    %173 = arith.divf %171, %172 : vector<16x96xf32>
    %174 = vector.extract_strided_slice %167 {offsets = [0, 96], sizes = [16, 32], strides = [1, 1]} : vector<16x128xf32> to vector<16x32xf32>
    %175 = math.tanh %174 : vector<16x32xf32>
    %176 = vector.extract_strided_slice %173 {offsets = [0, 0], sizes = [16, 32], strides = [1, 1]} : vector<16x96xf32> to vector<16x32xf32>
    %177 = vector.extract_strided_slice %173 {offsets = [0, 32], sizes = [16, 32], strides = [1, 1]} : vector<16x96xf32> to vector<16x32xf32>
    %178 = vector.extract_strided_slice %173 {offsets = [0, 64], sizes = [16, 32], strides = [1, 1]} : vector<16x96xf32> to vector<16x32xf32>
    %179 = arith.mulf %177, %159 : vector<16x32xf32>
    %180 = arith.mulf %176, %175 : vector<16x32xf32>
    %181 = arith.addf %179, %180 : vector<16x32xf32>
    %182 = math.tanh %181 : vector<16x32xf32>
    %183 = arith.mulf %178, %182 : vector<16x32xf32>
    %184 = arith.truncf %183 : vector<16x32xf32> to vector<16x32xbf16>
    %c112_50 = arith.constant 112 : index
    %c0_51 = arith.constant 0 : index
    %185 = vector.load %arg11[%c112_50, %c0_51] : memref<128x32xbf16, #tpu.memory_space<vmem>>, vector<16x32xbf16>
    tpu.vector_store %arg11[%c112_50, %c0_51], %184 {strides = array<i32>} : memref<128x32xbf16, #tpu.memory_space<vmem>>, vector<16x32xbf16>,
    %c0_52 = arith.constant 0 : index
    %c0_53 = arith.constant 0 : index
    %186 = vector.load %arg4[%c0_52, %c0_53] : memref<32x128xbf16, #tpu.memory_space<vmem>>, vector<32x128xbf16>
    %c0_54 = arith.constant 0 : index
    %c0_55 = arith.constant 0 : index
    %187 = vector.load %arg5[%c0_54, %c0_55] : memref<32x128xbf16, #tpu.memory_space<vmem>>, vector<32x128xbf16>
    %c0_56 = arith.constant 0 : index
    %c0_57 = arith.constant 0 : index
    %188 = vector.load %arg6[%c0_56, %c0_57] : memref<1x128xf32, #tpu.memory_space<vmem>>, vector<1x128xf32>
    %c0_58 = arith.constant 0 : index
    %c0_59 = arith.constant 0 : index
    %189 = vector.load %arg11[%c0_58, %c0_59] : memref<128x32xbf16, #tpu.memory_space<vmem>>, vector<128x32xbf16>
    %cst_60 = arith.constant dense<0.000000e+00> : vector<128x128xf32>
    %190 = tpu.matmul %189, %186, %cst_60 {dimension_numbers = #tpu.dot_dimension_numbers<[1], [0], [0], [1], [0, 0, 1, 1], [], []>} : vector<128x32xbf16>, vector<32x128xbf16>, vector<128x128xf32> -> vector<128x128xf32>
    %191 = vector.broadcast %188 : vector<1x128xf32> to vector<128x128xf32>
    %192 = arith.addf %190, %191 : vector<128x128xf32>
    %c0_61 = arith.constant 0 : index
    %c0_62 = arith.constant 0 : index
    %193 = vector.load %arg10[%c0_61, %c0_62] : memref<128x128xf32, #tpu.memory_space<vmem>>, vector<128x128xf32>
    tpu.vector_store %arg10[%c0_61, %c0_62], %192 {strides = array<i32>} : memref<128x128xf32, #tpu.memory_space<vmem>>, vector<128x128xf32>,
    %cst_63 = arith.constant 0.000000e+00 : f32
    %194 = vector.broadcast %cst_63 : f32 to vector<16x32xf32>
    %cst_64 = arith.constant 0.000000e+00 : f32
    %195 = vector.broadcast %cst_64 : f32 to vector<16x32xf32>
    %c0_65 = arith.constant 0 : index
    %c0_66 = arith.constant 0 : index
    %196 = vector.load %arg10[%c0_65, %c0_66] : memref<128x128xf32, #tpu.memory_space<vmem>>, vector<16x128xf32>
    %197 = arith.truncf %194 : vector<16x32xf32> to vector<16x32xbf16>
    %cst_67 = arith.constant dense<0.000000e+00> : vector<16x128xf32>
    %198 = tpu.matmul %197, %187, %cst_67 {dimension_numbers = #tpu.dot_dimension_numbers<[1], [0], [0], [1], [0, 0, 1, 1], [], []>} : vector<16x32xbf16>, vector<32x128xbf16>, vector<16x128xf32> -> vector<16x128xf32>
    %199 = arith.addf %196, %198 : vector<16x128xf32>
    %200 = vector.extract_strided_slice %199 {offsets = [0, 0], sizes = [16, 96], strides = [1, 1]} : vector<16x128xf32> to vector<16x96xf32>
    %201 = arith.negf %200 : vector<16x96xf32>
    %202 = math.exp %201 : vector<16x96xf32>
    %cst_68 = arith.constant 1.000000e+00 : f32
    %203 = vector.broadcast %cst_68 : f32 to vector<16x96xf32>
    %204 = arith.addf %203, %202 : vector<16x96xf32>
    %205 = arith.divf %203, %204 : vector<16x96xf32>
    %206 = vector.extract_strided_slice %199 {offsets = [0, 96], sizes = [16, 32], strides = [1, 1]} : vector<16x128xf32> to vector<16x32xf32>
    %207 = math.tanh %206 : vector<16x32xf32>
    %208 = vector.extract_strided_slice %205 {offsets = [0, 0], sizes = [16, 32], strides = [1, 1]} : vector<16x96xf32> to vector<16x32xf32>
    %209 = vector.extract_strided_slice %205 {offsets = [0, 32], sizes = [16, 32], strides = [1, 1]} : vector<16x96xf32> to vector<16x32xf32>
    %210 = vector.extract_strided_slice %205 {offsets = [0, 64], sizes = [16, 32], strides = [1, 1]} : vector<16x96xf32> to vector<16x32xf32>
    %211 = arith.mulf %209, %195 : vector<16x32xf32>
    %212 = arith.mulf %208, %207 : vector<16x32xf32>
    %213 = arith.addf %211, %212 : vector<16x32xf32>
    %214 = math.tanh %213 : vector<16x32xf32>
    %215 = arith.mulf %210, %214 : vector<16x32xf32>
    %c16_69 = arith.constant 16 : index
    %c0_70 = arith.constant 0 : index
    %216 = vector.load %arg10[%c16_69, %c0_70] : memref<128x128xf32, #tpu.memory_space<vmem>>, vector<16x128xf32>
    %217 = arith.truncf %215 : vector<16x32xf32> to vector<16x32xbf16>
    %cst_71 = arith.constant dense<0.000000e+00> : vector<16x128xf32>
    %218 = tpu.matmul %217, %187, %cst_71 {dimension_numbers = #tpu.dot_dimension_numbers<[1], [0], [0], [1], [0, 0, 1, 1], [], []>} : vector<16x32xbf16>, vector<32x128xbf16>, vector<16x128xf32> -> vector<16x128xf32>
    %219 = arith.addf %216, %218 : vector<16x128xf32>
    %220 = vector.extract_strided_slice %219 {offsets = [0, 0], sizes = [16, 96], strides = [1, 1]} : vector<16x128xf32> to vector<16x96xf32>
    %221 = arith.negf %220 : vector<16x96xf32>
    %222 = math.exp %221 : vector<16x96xf32>
    %cst_72 = arith.constant 1.000000e+00 : f32
    %223 = vector.broadcast %cst_72 : f32 to vector<16x96xf32>
    %224 = arith.addf %223, %222 : vector<16x96xf32>
    %225 = arith.divf %223, %224 : vector<16x96xf32>
    %226 = vector.extract_strided_slice %219 {offsets = [0, 96], sizes = [16, 32], strides = [1, 1]} : vector<16x128xf32> to vector<16x32xf32>
    %227 = math.tanh %226 : vector<16x32xf32>
    %228 = vector.extract_strided_slice %225 {offsets = [0, 0], sizes = [16, 32], strides = [1, 1]} : vector<16x96xf32> to vector<16x32xf32>
    %229 = vector.extract_strided_slice %225 {offsets = [0, 32], sizes = [16, 32], strides = [1, 1]} : vector<16x96xf32> to vector<16x32xf32>
    %230 = vector.extract_strided_slice %225 {offsets = [0, 64], sizes = [16, 32], strides = [1, 1]} : vector<16x96xf32> to vector<16x32xf32>
    %231 = arith.mulf %229, %213 : vector<16x32xf32>
    %232 = arith.mulf %228, %227 : vector<16x32xf32>
    %233 = arith.addf %231, %232 : vector<16x32xf32>
    %234 = math.tanh %233 : vector<16x32xf32>
    %235 = arith.mulf %230, %234 : vector<16x32xf32>
    %c32_73 = arith.constant 32 : index
    %c0_74 = arith.constant 0 : index
    %236 = vector.load %arg10[%c32_73, %c0_74] : memref<128x128xf32, #tpu.memory_space<vmem>>, vector<16x128xf32>
    %237 = arith.truncf %235 : vector<16x32xf32> to vector<16x32xbf16>
    %cst_75 = arith.constant dense<0.000000e+00> : vector<16x128xf32>
    %238 = tpu.matmul %237, %187, %cst_75 {dimension_numbers = #tpu.dot_dimension_numbers<[1], [0], [0], [1], [0, 0, 1, 1], [], []>} : vector<16x32xbf16>, vector<32x128xbf16>, vector<16x128xf32> -> vector<16x128xf32>
    %239 = arith.addf %236, %238 : vector<16x128xf32>
    %240 = vector.extract_strided_slice %239 {offsets = [0, 0], sizes = [16, 96], strides = [1, 1]} : vector<16x128xf32> to vector<16x96xf32>
    %241 = arith.negf %240 : vector<16x96xf32>
    %242 = math.exp %241 : vector<16x96xf32>
    %cst_76 = arith.constant 1.000000e+00 : f32
    %243 = vector.broadcast %cst_76 : f32 to vector<16x96xf32>
    %244 = arith.addf %243, %242 : vector<16x96xf32>
    %245 = arith.divf %243, %244 : vector<16x96xf32>
    %246 = vector.extract_strided_slice %239 {offsets = [0, 96], sizes = [16, 32], strides = [1, 1]} : vector<16x128xf32> to vector<16x32xf32>
    %247 = math.tanh %246 : vector<16x32xf32>
    %248 = vector.extract_strided_slice %245 {offsets = [0, 0], sizes = [16, 32], strides = [1, 1]} : vector<16x96xf32> to vector<16x32xf32>
    %249 = vector.extract_strided_slice %245 {offsets = [0, 32], sizes = [16, 32], strides = [1, 1]} : vector<16x96xf32> to vector<16x32xf32>
    %250 = vector.extract_strided_slice %245 {offsets = [0, 64], sizes = [16, 32], strides = [1, 1]} : vector<16x96xf32> to vector<16x32xf32>
    %251 = arith.mulf %249, %233 : vector<16x32xf32>
    %252 = arith.mulf %248, %247 : vector<16x32xf32>
    %253 = arith.addf %251, %252 : vector<16x32xf32>
    %254 = math.tanh %253 : vector<16x32xf32>
    %255 = arith.mulf %250, %254 : vector<16x32xf32>
    %c48_77 = arith.constant 48 : index
    %c0_78 = arith.constant 0 : index
    %256 = vector.load %arg10[%c48_77, %c0_78] : memref<128x128xf32, #tpu.memory_space<vmem>>, vector<16x128xf32>
    %257 = arith.truncf %255 : vector<16x32xf32> to vector<16x32xbf16>
    %cst_79 = arith.constant dense<0.000000e+00> : vector<16x128xf32>
    %258 = tpu.matmul %257, %187, %cst_79 {dimension_numbers = #tpu.dot_dimension_numbers<[1], [0], [0], [1], [0, 0, 1, 1], [], []>} : vector<16x32xbf16>, vector<32x128xbf16>, vector<16x128xf32> -> vector<16x128xf32>
    %259 = arith.addf %256, %258 : vector<16x128xf32>
    %260 = vector.extract_strided_slice %259 {offsets = [0, 0], sizes = [16, 96], strides = [1, 1]} : vector<16x128xf32> to vector<16x96xf32>
    %261 = arith.negf %260 : vector<16x96xf32>
    %262 = math.exp %261 : vector<16x96xf32>
    %cst_80 = arith.constant 1.000000e+00 : f32
    %263 = vector.broadcast %cst_80 : f32 to vector<16x96xf32>
    %264 = arith.addf %263, %262 : vector<16x96xf32>
    %265 = arith.divf %263, %264 : vector<16x96xf32>
    %266 = vector.extract_strided_slice %259 {offsets = [0, 96], sizes = [16, 32], strides = [1, 1]} : vector<16x128xf32> to vector<16x32xf32>
    %267 = math.tanh %266 : vector<16x32xf32>
    %268 = vector.extract_strided_slice %265 {offsets = [0, 0], sizes = [16, 32], strides = [1, 1]} : vector<16x96xf32> to vector<16x32xf32>
    %269 = vector.extract_strided_slice %265 {offsets = [0, 32], sizes = [16, 32], strides = [1, 1]} : vector<16x96xf32> to vector<16x32xf32>
    %270 = vector.extract_strided_slice %265 {offsets = [0, 64], sizes = [16, 32], strides = [1, 1]} : vector<16x96xf32> to vector<16x32xf32>
    %271 = arith.mulf %269, %253 : vector<16x32xf32>
    %272 = arith.mulf %268, %267 : vector<16x32xf32>
    %273 = arith.addf %271, %272 : vector<16x32xf32>
    %274 = math.tanh %273 : vector<16x32xf32>
    %275 = arith.mulf %270, %274 : vector<16x32xf32>
    %c64_81 = arith.constant 64 : index
    %c0_82 = arith.constant 0 : index
    %276 = vector.load %arg10[%c64_81, %c0_82] : memref<128x128xf32, #tpu.memory_space<vmem>>, vector<16x128xf32>
    %277 = arith.truncf %275 : vector<16x32xf32> to vector<16x32xbf16>
    %cst_83 = arith.constant dense<0.000000e+00> : vector<16x128xf32>
    %278 = tpu.matmul %277, %187, %cst_83 {dimension_numbers = #tpu.dot_dimension_numbers<[1], [0], [0], [1], [0, 0, 1, 1], [], []>} : vector<16x32xbf16>, vector<32x128xbf16>, vector<16x128xf32> -> vector<16x128xf32>
    %279 = arith.addf %276, %278 : vector<16x128xf32>
    %280 = vector.extract_strided_slice %279 {offsets = [0, 0], sizes = [16, 96], strides = [1, 1]} : vector<16x128xf32> to vector<16x96xf32>
    %281 = arith.negf %280 : vector<16x96xf32>
    %282 = math.exp %281 : vector<16x96xf32>
    %cst_84 = arith.constant 1.000000e+00 : f32
    %283 = vector.broadcast %cst_84 : f32 to vector<16x96xf32>
    %284 = arith.addf %283, %282 : vector<16x96xf32>
    %285 = arith.divf %283, %284 : vector<16x96xf32>
    %286 = vector.extract_strided_slice %279 {offsets = [0, 96], sizes = [16, 32], strides = [1, 1]} : vector<16x128xf32> to vector<16x32xf32>
    %287 = math.tanh %286 : vector<16x32xf32>
    %288 = vector.extract_strided_slice %285 {offsets = [0, 0], sizes = [16, 32], strides = [1, 1]} : vector<16x96xf32> to vector<16x32xf32>
    %289 = vector.extract_strided_slice %285 {offsets = [0, 32], sizes = [16, 32], strides = [1, 1]} : vector<16x96xf32> to vector<16x32xf32>
    %290 = vector.extract_strided_slice %285 {offsets = [0, 64], sizes = [16, 32], strides = [1, 1]} : vector<16x96xf32> to vector<16x32xf32>
    %291 = arith.mulf %289, %273 : vector<16x32xf32>
    %292 = arith.mulf %288, %287 : vector<16x32xf32>
    %293 = arith.addf %291, %292 : vector<16x32xf32>
    %294 = math.tanh %293 : vector<16x32xf32>
    %295 = arith.mulf %290, %294 : vector<16x32xf32>
    %c80_85 = arith.constant 80 : index
    %c0_86 = arith.constant 0 : index
    %296 = vector.load %arg10[%c80_85, %c0_86] : memref<128x128xf32, #tpu.memory_space<vmem>>, vector<16x128xf32>
    %297 = arith.truncf %295 : vector<16x32xf32> to vector<16x32xbf16>
    %cst_87 = arith.constant dense<0.000000e+00> : vector<16x128xf32>
    %298 = tpu.matmul %297, %187, %cst_87 {dimension_numbers = #tpu.dot_dimension_numbers<[1], [0], [0], [1], [0, 0, 1, 1], [], []>} : vector<16x32xbf16>, vector<32x128xbf16>, vector<16x128xf32> -> vector<16x128xf32>
    %299 = arith.addf %296, %298 : vector<16x128xf32>
    %300 = vector.extract_strided_slice %299 {offsets = [0, 0], sizes = [16, 96], strides = [1, 1]} : vector<16x128xf32> to vector<16x96xf32>
    %301 = arith.negf %300 : vector<16x96xf32>
    %302 = math.exp %301 : vector<16x96xf32>
    %cst_88 = arith.constant 1.000000e+00 : f32
    %303 = vector.broadcast %cst_88 : f32 to vector<16x96xf32>
    %304 = arith.addf %303, %302 : vector<16x96xf32>
    %305 = arith.divf %303, %304 : vector<16x96xf32>
    %306 = vector.extract_strided_slice %299 {offsets = [0, 96], sizes = [16, 32], strides = [1, 1]} : vector<16x128xf32> to vector<16x32xf32>
    %307 = math.tanh %306 : vector<16x32xf32>
    %308 = vector.extract_strided_slice %305 {offsets = [0, 0], sizes = [16, 32], strides = [1, 1]} : vector<16x96xf32> to vector<16x32xf32>
    %309 = vector.extract_strided_slice %305 {offsets = [0, 32], sizes = [16, 32], strides = [1, 1]} : vector<16x96xf32> to vector<16x32xf32>
    %310 = vector.extract_strided_slice %305 {offsets = [0, 64], sizes = [16, 32], strides = [1, 1]} : vector<16x96xf32> to vector<16x32xf32>
    %311 = arith.mulf %309, %293 : vector<16x32xf32>
    %312 = arith.mulf %308, %307 : vector<16x32xf32>
    %313 = arith.addf %311, %312 : vector<16x32xf32>
    %314 = math.tanh %313 : vector<16x32xf32>
    %315 = arith.mulf %310, %314 : vector<16x32xf32>
    %c96_89 = arith.constant 96 : index
    %c0_90 = arith.constant 0 : index
    %316 = vector.load %arg10[%c96_89, %c0_90] : memref<128x128xf32, #tpu.memory_space<vmem>>, vector<16x128xf32>
    %317 = arith.truncf %315 : vector<16x32xf32> to vector<16x32xbf16>
    %cst_91 = arith.constant dense<0.000000e+00> : vector<16x128xf32>
    %318 = tpu.matmul %317, %187, %cst_91 {dimension_numbers = #tpu.dot_dimension_numbers<[1], [0], [0], [1], [0, 0, 1, 1], [], []>} : vector<16x32xbf16>, vector<32x128xbf16>, vector<16x128xf32> -> vector<16x128xf32>
    %319 = arith.addf %316, %318 : vector<16x128xf32>
    %320 = vector.extract_strided_slice %319 {offsets = [0, 0], sizes = [16, 96], strides = [1, 1]} : vector<16x128xf32> to vector<16x96xf32>
    %321 = arith.negf %320 : vector<16x96xf32>
    %322 = math.exp %321 : vector<16x96xf32>
    %cst_92 = arith.constant 1.000000e+00 : f32
    %323 = vector.broadcast %cst_92 : f32 to vector<16x96xf32>
    %324 = arith.addf %323, %322 : vector<16x96xf32>
    %325 = arith.divf %323, %324 : vector<16x96xf32>
    %326 = vector.extract_strided_slice %319 {offsets = [0, 96], sizes = [16, 32], strides = [1, 1]} : vector<16x128xf32> to vector<16x32xf32>
    %327 = math.tanh %326 : vector<16x32xf32>
    %328 = vector.extract_strided_slice %325 {offsets = [0, 0], sizes = [16, 32], strides = [1, 1]} : vector<16x96xf32> to vector<16x32xf32>
    %329 = vector.extract_strided_slice %325 {offsets = [0, 32], sizes = [16, 32], strides = [1, 1]} : vector<16x96xf32> to vector<16x32xf32>
    %330 = vector.extract_strided_slice %325 {offsets = [0, 64], sizes = [16, 32], strides = [1, 1]} : vector<16x96xf32> to vector<16x32xf32>
    %331 = arith.mulf %329, %313 : vector<16x32xf32>
    %332 = arith.mulf %328, %327 : vector<16x32xf32>
    %333 = arith.addf %331, %332 : vector<16x32xf32>
    %334 = math.tanh %333 : vector<16x32xf32>
    %335 = arith.mulf %330, %334 : vector<16x32xf32>
    %c112_93 = arith.constant 112 : index
    %c0_94 = arith.constant 0 : index
    %336 = vector.load %arg10[%c112_93, %c0_94] : memref<128x128xf32, #tpu.memory_space<vmem>>, vector<16x128xf32>
    %337 = arith.truncf %335 : vector<16x32xf32> to vector<16x32xbf16>
    %cst_95 = arith.constant dense<0.000000e+00> : vector<16x128xf32>
    %338 = tpu.matmul %337, %187, %cst_95 {dimension_numbers = #tpu.dot_dimension_numbers<[1], [0], [0], [1], [0, 0, 1, 1], [], []>} : vector<16x32xbf16>, vector<32x128xbf16>, vector<16x128xf32> -> vector<16x128xf32>
    %339 = arith.addf %336, %338 : vector<16x128xf32>
    %340 = vector.extract_strided_slice %339 {offsets = [0, 0], sizes = [16, 96], strides = [1, 1]} : vector<16x128xf32> to vector<16x96xf32>
    %341 = arith.negf %340 : vector<16x96xf32>
    %342 = math.exp %341 : vector<16x96xf32>
    %cst_96 = arith.constant 1.000000e+00 : f32
    %343 = vector.broadcast %cst_96 : f32 to vector<16x96xf32>
    %344 = arith.addf %343, %342 : vector<16x96xf32>
    %345 = arith.divf %343, %344 : vector<16x96xf32>
    %346 = vector.extract_strided_slice %339 {offsets = [0, 96], sizes = [16, 32], strides = [1, 1]} : vector<16x128xf32> to vector<16x32xf32>
    %347 = math.tanh %346 : vector<16x32xf32>
    %348 = vector.extract_strided_slice %345 {offsets = [0, 0], sizes = [16, 32], strides = [1, 1]} : vector<16x96xf32> to vector<16x32xf32>
    %349 = vector.extract_strided_slice %345 {offsets = [0, 32], sizes = [16, 32], strides = [1, 1]} : vector<16x96xf32> to vector<16x32xf32>
    %350 = vector.extract_strided_slice %345 {offsets = [0, 64], sizes = [16, 32], strides = [1, 1]} : vector<16x96xf32> to vector<16x32xf32>
    %351 = arith.mulf %349, %333 : vector<16x32xf32>
    %352 = arith.mulf %348, %347 : vector<16x32xf32>
    %353 = arith.addf %351, %352 : vector<16x32xf32>
    %354 = math.tanh %353 : vector<16x32xf32>
    %355 = arith.mulf %350, %354 : vector<16x32xf32>
    %356 = arith.truncf %355 : vector<16x32xf32> to vector<16x32xbf16>
    %c0_97 = arith.constant 0 : index
    %c0_98 = arith.constant 0 : index
    %357 = vector.load %arg7[%c0_97, %c0_98] : memref<32x8xbf16, #tpu.memory_space<vmem>>, vector<32x8xbf16>
    %cst_99 = arith.constant dense<0.000000e+00> : vector<16x8xf32>
    %358 = tpu.matmul %356, %357, %cst_99 {dimension_numbers = #tpu.dot_dimension_numbers<[1], [0], [0], [1], [0, 0, 1, 1], [], []>} : vector<16x32xbf16>, vector<32x8xbf16>, vector<16x8xf32> -> vector<16x8xf32>
    %c0_100 = arith.constant 0 : index
    %c0_101 = arith.constant 0 : index
    %359 = vector.load %arg8[%c0_100, %c0_101] : memref<1x8xf32, #tpu.memory_space<vmem>>, vector<1x8xf32>
    %360 = vector.broadcast %359 : vector<1x8xf32> to vector<16x8xf32>
    %361 = arith.addf %358, %360 : vector<16x8xf32>
    %c0_102 = arith.constant 0 : index
    %c0_103 = arith.constant 0 : index
    %362 = vector.load %arg9[%c0_102, %c0_103] : memref<16x8xf32, #tpu.memory_space<vmem>>, vector<16x8xf32>
    tpu.vector_store %arg9[%c0_102, %c0_103], %361 {strides = array<i32>} : memref<16x8xf32, #tpu.memory_space<vmem>>, vector<16x8xf32>,
    return
  }
}

</mosaic_0001>

<llo_original>
// kernel: tpu_custom_call.1
$region0: #{tpu_custom_call.1}
  #allocation0 [shape = 'u32[]', space=smem, size = 0x4, offset = 0x4, fixed_abs, tag = 'smem constant byte address 0x4 - core index']
  #allocation1 [shape = 'u32[144,128]{1,0:T(1,128)}', space=vmem, size = 0x12000, scoped, tag = 'internal scratch']
  #allocation2 [shape = 'f32[128,128]{1,0:T(8,128)}', space=vmem, size = 0x10000, scoped, tag = 'scratch operand']
  #allocation3 [shape = 'bf16[128,32]{1,0:T(8,128)(2,1)}', space=vmem, size = 0x8000, scoped, tag = 'scratch operand']
  %s0 = inlined_call_operand.vmem [shape: bf16[128,16], index: 0, kind: input, shape index: {}]
  %s1 = inlined_call_operand.vmem [shape: bf16[16,128], index: 1, kind: input, shape index: {}]
  %s2 = inlined_call_operand.vmem [shape: bf16[32,128], index: 2, kind: input, shape index: {}]
  %s3 = inlined_call_operand.vmem [shape: f32[1,128], index: 3, kind: input, shape index: {}]
  %s4 = inlined_call_operand.vmem [shape: bf16[32,128], index: 4, kind: input, shape index: {}]
  %s5 = inlined_call_operand.vmem [shape: bf16[32,128], index: 5, kind: input, shape index: {}]
  %s6 = inlined_call_operand.vmem [shape: f32[1,128], index: 6, kind: input, shape index: {}]
  %s7 = inlined_call_operand.vmem [shape: bf16[32,8], index: 7, kind: input, shape index: {}]
  %s8 = inlined_call_operand.vmem [shape: f32[1,8], index: 8, kind: input, shape index: {}]
  %s9 = inlined_call_operand.vmem [shape: f32[16,8], index: 9, kind: output, shape index: {}]
  %s10 = sld [smem:[#allocation0]]
  $region46: #{tpu_custom_call.1} parent=0
    _
  %s12 = ssub.s32 1, %s10
  %s13 = scalar_select 0, %s12, %s10
  // Predicated region
  $region2: #{tpu_custom_call.1} parent=0 // pred_check
    _
  $region3: #{tpu_custom_call.1} parent=0 // pred_check_branch
    %15 = sbr.rel (0) target = $region5
  $region4: #{tpu_custom_call.1} parent=0 // pred_region
    _
  $region5: #{tpu_custom_call.1} parent=0 // pred_fallthru
    _
  // Predicated region
  $region6: #{tpu_custom_call.1} parent=0 // pred_check
    _
  $region7: #{tpu_custom_call.1} parent=0 // pred_check_branch
    %17 = sbr.rel (0) target = $region9
  $region8: #{tpu_custom_call.1} parent=0 // pred_region
    _
  $region9: #{tpu_custom_call.1} parent=0 // pred_fallthru
    _
  // Predicated region
  $region10: #{tpu_custom_call.1} parent=0 // pred_check
    _
  $region11: #{tpu_custom_call.1} parent=0 // pred_check_branch
    %19 = sbr.rel (0) target = $region13
  $region12: #{tpu_custom_call.1} parent=0 // pred_region
    _
  $region13: #{tpu_custom_call.1} parent=0 // pred_fallthru
    _
  // Predicated region
  $region14: #{tpu_custom_call.1} parent=0 // pred_check
    _
  $region15: #{tpu_custom_call.1} parent=0 // pred_check_branch
    %21 = sbr.rel (0) target = $region17
  $region16: #{tpu_custom_call.1} parent=0 // pred_region
    _
  $region17: #{tpu_custom_call.1} parent=0 // pred_fallthru
    _
  // Predicated region
  $region18: #{tpu_custom_call.1} parent=0 // pred_check
    _
  $region19: #{tpu_custom_call.1} parent=0 // pred_check_branch
    %23 = sbr.rel (0) target = $region21
  $region20: #{tpu_custom_call.1} parent=0 // pred_region
    _
  $region21: #{tpu_custom_call.1} parent=0 // pred_fallthru
    _
  // Predicated region
  $region22: #{tpu_custom_call.1} parent=0 // pred_check
    _
  $region23: #{tpu_custom_call.1} parent=0 // pred_check_branch
    %25 = sbr.rel (0) target = $region25
  $region24: #{tpu_custom_call.1} parent=0 // pred_region
    _
  $region25: #{tpu_custom_call.1} parent=0 // pred_fallthru
    _
  // Predicated region
  $region26: #{tpu_custom_call.1} parent=0 // pred_check
    _
  $region27: #{tpu_custom_call.1} parent=0 // pred_check_branch
    %27 = sbr.rel (0) target = $region29
  $region28: #{tpu_custom_call.1} parent=0 // pred_region
    _
  $region29: #{tpu_custom_call.1} parent=0 // pred_fallthru
    _
  // Predicated region
  $region30: #{tpu_custom_call.1} parent=0 // pred_check
    _
  $region31: #{tpu_custom_call.1} parent=0 // pred_check_branch
    %29 = sbr.rel (0) target = $region33
  $region32: #{tpu_custom_call.1} parent=0 // pred_region
    _
  $region33: #{tpu_custom_call.1} parent=0 // pred_fallthru
    _
  // Predicated region
  $region34: #{tpu_custom_call.1} parent=0 // pred_check
    _
  $region35: #{tpu_custom_call.1} parent=0 // pred_check_branch
    %31 = sbr.rel (0) target = $region37
  $region36: #{tpu_custom_call.1} parent=0 // pred_region
    _
  $region37: #{tpu_custom_call.1} parent=0 // pred_fallthru
    _
  %v33 = vld [vmem:[%s1] sm:$0xf]
  %v34 = vld [vmem:[%s1 + $0x4] sm:$0xf]
  %v35 = vld [vmem:[%s2] sm:$0xf]
  %v36 = vld [vmem:[%s2 + $0x4] sm:$0xf]
  %v37 = vld [vmem:[%s2 + $0x8] sm:$0xf]
  %v38 = vld [vmem:[%s2 + $0xc] sm:$0xf]
  %v39 = vld [vmem:[%s3] sm:$0x1]
  %v40 = vld [vmem:[%s0] sm:$0xf]
  %v41 = vld [vmem:[%s0 + $0x4] sm:$0xf]
  %v42 = vld [vmem:[%s0 + $0x8] sm:$0xf]
  %v43 = vld [vmem:[%s0 + $0xc] sm:$0xf]
  %v44 = vld [vmem:[%s0 + $0x10] sm:$0xf]
  %v45 = vld [vmem:[%s0 + $0x14] sm:$0xf]
  %v46 = vld [vmem:[%s0 + $0x18] sm:$0xf]
  %v47 = vld [vmem:[%s0 + $0x1c] sm:$0xf]
  %v48 = vld [vmem:[%s0 + $0x20] sm:$0xf]
  %v49 = vld [vmem:[%s0 + $0x24] sm:$0xf]
  %v50 = vld [vmem:[%s0 + $0x28] sm:$0xf]
  %v51 = vld [vmem:[%s0 + $0x2c] sm:$0xf]
  %v52 = vld [vmem:[%s0 + $0x30] sm:$0xf]
  %v53 = vld [vmem:[%s0 + $0x34] sm:$0xf]
  %v54 = vld [vmem:[%s0 + $0x38] sm:$0xf]
  %v55 = vld [vmem:[%s0 + $0x3c] sm:$0xf]
  %v57 = vlaneseq
  %v58 = vshrl.u32 %v57, 7
  %v59 = vsub.s32 0, %v58
  %v60 = vrot.slane %v39, %v59
  %v78 = vunpack.c.l.b16 %v40
  %v79 = vunpack.c.l.b16 %v41
  %v80 = vunpack.c.l.b16 %v42
  %v81 = vunpack.c.l.b16 %v43
  %v82 = vunpack.c.l.b16 %v44
  %v83 = vunpack.c.l.b16 %v45
  %v84 = vunpack.c.l.b16 %v46
  %v85 = vunpack.c.l.b16 %v47
  %v86 = vunpack.c.l.b16 %v48
  %v87 = vunpack.c.l.b16 %v49
  %v88 = vunpack.c.l.b16 %v50
  %v89 = vunpack.c.l.b16 %v51
  %v90 = vunpack.c.l.b16 %v52
  %v91 = vunpack.c.l.b16 %v53
  %v92 = vunpack.c.l.b16 %v54
  %v93 = vunpack.c.l.b16 %v55
  %v94 = vpack.c.b16 %v79, %v78
  %v95 = vpack.c.b16 %v81, %v80
  %v96 = vpack.c.b16 %v83, %v82
  %v97 = vpack.c.b16 %v85, %v84
  %v98 = vpack.c.b16 %v87, %v86
  %v99 = vpack.c.b16 %v89, %v88
  %v100 = vpack.c.b16 %v91, %v90
  %v101 = vpack.c.b16 %v93, %v92
  %v104 = vunpack.c.l.b16 %v33
  %v105 = vunpack.c.l.b16 %v34
  %v106 = vpack.c.b16 %v105, %v104
  %vm108 = vcmask 130048
  %v110 = vsel %vm108, %v94, 0
  %v113 = vsel %vm108, %v95, 0
  %v116 = vsel %vm108, %v96, 0
  %v119 = vsel %vm108, %v97, 0
  %v122 = vsel %vm108, %v98, 0
  %v125 = vsel %vm108, %v99, 0
  %v128 = vsel %vm108, %v100, 0
  %v131 = vsel %vm108, %v101, 0
  %133 = vmatprep.subr.bf16.mxu0 0
  %134 = vmatpush1.bf16.msra.mxu0 0
  %135 = vmatprep.subr.bf16.mxu0 0
  %136 = vmatpush1.bf16.msra.mxu0 0
  %137 = vmatprep.subr.bf16.mxu0 0
  %138 = vmatpush1.bf16.msra.mxu0 0
  %139 = vmatprep.subr.bf16.mxu0 0
  %140 = vmatpush1.bf16.msra.mxu0 0
  %141 = vmatprep.subr.bf16.mxu0 0
  %142 = vmatpush1.bf16.msra.mxu0 0
  %143 = vmatprep.subr.bf16.mxu0 0
  %144 = vmatpush1.bf16.msra.mxu0 0
  %145 = vmatprep.subr.bf16.mxu0 0
  %146 = vmatpush1.bf16.msra.mxu0 0
  %147 = vmatprep.subr.bf16.mxu0 0
  %148 = vmatpush1.bf16.msra.mxu0 %v106
  %149 = vmatprep.subr.bf16.mxu0 0
  %150 = vmatpush2.bf16.msra.mxu0 0
  %151 = vmatprep.subr.bf16.mxu0 0
  %152 = vmatpush2.bf16.msra.mxu0 0
  %153 = vmatprep.subr.bf16.mxu0 0
  %154 = vmatpush2.bf16.msra.mxu0 0
  %155 = vmatprep.subr.bf16.mxu0 0
  %156 = vmatpush2.bf16.msra.mxu0 0
  %157 = vmatprep.subr.bf16.mxu0 0
  %158 = vmatpush2.bf16.msra.mxu0 0
  %159 = vmatprep.subr.bf16.mxu0 0
  %160 = vmatpush2.bf16.msra.mxu0 0
  %161 = vmatprep.subr.bf16.mxu0 0
  %162 = vmatpush2.bf16.msra.mxu0 0
  %163 = vmatprep.subr.bf16.mxu0 0
  %164 = vmatpush2.bf16.msra.mxu0 0
  %165 = vmatprep.mubr.bf16.mxu0 0
  %166 = vmatmul.mubr.bf16.gmra.mxu0 %v110
  %v167 = vpop.f32.mrf.mxu0
  %v168 = vadd.f32 %v60, %v167
  %v169 = vpop.f32.mrf.mxu0
  %v170 = vpop.f32.mrf.mxu0
  %v171 = vadd.f32 %v60, %v170
  %v172 = vpop.f32.mrf.mxu0
  %173 = vmatprep.mubr.bf16.mxu0 0
  %174 = vmatmul.mubr.bf16.gmra.mxu0 %v113
  %v175 = vpop.f32.mrf.mxu0
  %v176 = vadd.f32 %v60, %v175
  %v177 = vpop.f32.mrf.mxu0
  %v178 = vpop.f32.mrf.mxu0
  %v179 = vadd.f32 %v60, %v178
  %v180 = vpop.f32.mrf.mxu0
  %181 = vmatprep.mubr.bf16.mxu0 0
  %182 = vmatmul.mubr.bf16.gmra.mxu0 %v116
  %v183 = vpop.f32.mrf.mxu0
  %v184 = vadd.f32 %v60, %v183
  %v185 = vpop.f32.mrf.mxu0
  %v186 = vpop.f32.mrf.mxu0
  %v187 = vadd.f32 %v60, %v186
  %v188 = vpop.f32.mrf.mxu0
  %189 = vmatprep.mubr.bf16.mxu0 0
  %190 = vmatmul.mubr.bf16.gmra.mxu0 %v119
  %v191 = vpop.f32.mrf.mxu0
  %v192 = vadd.f32 %v60, %v191
  %v193 = vpop.f32.mrf.mxu0
  %v194 = vpop.f32.mrf.mxu0
  %v195 = vadd.f32 %v60, %v194
  %v196 = vpop.f32.mrf.mxu0
  %197 = vmatprep.mubr.bf16.mxu0 0
  %198 = vmatmul.mubr.bf16.gmra.mxu0 %v122
  %v199 = vpop.f32.mrf.mxu0
  %v200 = vadd.f32 %v60, %v199
  %v201 = vpop.f32.mrf.mxu0
  %v202 = vpop.f32.mrf.mxu0
  %v203 = vadd.f32 %v60, %v202
  %v204 = vpop.f32.mrf.mxu0
  %205 = vmatprep.mubr.bf16.mxu0 0
  %206 = vmatmul.mubr.bf16.gmra.mxu0 %v125
  %v207 = vpop.f32.mrf.mxu0
  %v208 = vadd.f32 %v60, %v207
  %v209 = vpop.f32.mrf.mxu0
  %v210 = vpop.f32.mrf.mxu0
  %v211 = vadd.f32 %v60, %v210
  %v212 = vpop.f32.mrf.mxu0
  %213 = vmatprep.mubr.bf16.mxu0 0
  %214 = vmatmul.mubr.bf16.gmra.mxu0 %v128
  %v215 = vpop.f32.mrf.mxu0
  %v216 = vadd.f32 %v60, %v215
  %v217 = vpop.f32.mrf.mxu0
  %v218 = vpop.f32.mrf.mxu0
  %v219 = vadd.f32 %v60, %v218
  %v220 = vpop.f32.mrf.mxu0
  %221 = vmatprep.mubr.bf16.mxu0 0
  %222 = vmatmul.mubr.bf16.gmra.mxu0 %v131
  %v223 = vpop.f32.mrf.mxu0
  %v224 = vadd.f32 %v60, %v223
  %v225 = vpop.f32.mrf.mxu0
  %v226 = vpop.f32.mrf.mxu0
  %v227 = vadd.f32 %v60, %v226
  %v228 = vpop.f32.mrf.mxu0
  %229 = vdwg.mxu0
  %230 = vst [vmem:[#allocation2] sm:$0xff] %v168
  %231 = vst [vmem:[#allocation2 + $0x8] sm:$0xff] %v171
  %232 = vst [vmem:[#allocation2 + $0x10] sm:$0xff] %v176
  %233 = vst [vmem:[#allocation2 + $0x18] sm:$0xff] %v179
  %234 = vst [vmem:[#allocation2 + $0x20] sm:$0xff] %v184
  %235 = vst [vmem:[#allocation2 + $0x28] sm:$0xff] %v187
  %236 = vst [vmem:[#allocation2 + $0x30] sm:$0xff] %v192
  %237 = vst [vmem:[#allocation2 + $0x38] sm:$0xff] %v195
  %238 = vst [vmem:[#allocation2 + $0x40] sm:$0xff] %v200
  %239 = vst [vmem:[#allocation2 + $0x48] sm:$0xff] %v203
  %240 = vst [vmem:[#allocation2 + $0x50] sm:$0xff] %v208
  %241 = vst [vmem:[#allocation2 + $0x58] sm:$0xff] %v211
  %242 = vst [vmem:[#allocation2 + $0x60] sm:$0xff] %v216
  %243 = vst [vmem:[#allocation2 + $0x68] sm:$0xff] %v219
  %244 = vst [vmem:[#allocation2 + $0x70] sm:$0xff] %v224
  %245 = vst [vmem:[#allocation2 + $0x78] sm:$0xff] %v227
  %v246 = vld [vmem:[#allocation2] sm:$0xff]
  %v247 = vld [vmem:[#allocation2 + $0x8] sm:$0xff]
  %v252 = vunpack.c.l.b16 %v35
  %v253 = vunpack.c.l.b16 %v36
  %v254 = vunpack.c.l.b16 %v37
  %v255 = vunpack.c.l.b16 %v38
  %v256 = vpack.c.b16 %v253, %v252
  %v257 = vpack.c.b16 %v255, %v254
  %vm260 = vcmask 261120
  %v262 = vsel %vm260, 0, 0
  %264 = vmatprep.subr.bf16.mxu0 0
  %265 = vmatpush1.bf16.msra.mxu0 0
  %266 = vmatprep.subr.bf16.mxu0 0
  %267 = vmatpush1.bf16.msra.mxu0 0
  %268 = vmatprep.subr.bf16.mxu0 0
  %269 = vmatpush1.bf16.msra.mxu0 0
  %270 = vmatprep.subr.bf16.mxu0 0
  %271 = vmatpush1.bf16.msra.mxu0 0
  %272 = vmatprep.subr.bf16.mxu0 0
  %273 = vmatpush1.bf16.msra.mxu0 0
  %274 = vmatprep.subr.bf16.mxu0 0
  %275 = vmatpush1.bf16.msra.mxu0 0
  %276 = vmatprep.subr.bf16.mxu0 0
  %277 = vmatpush1.bf16.msra.mxu0 %v257
  %278 = vmatprep.subr.bf16.mxu0 0
  %279 = vmatpush1.bf16.msra.mxu0 %v256
  %280 = vmatprep.subr.bf16.mxu0 0
  %281 = vmatpush2.bf16.msra.mxu0 0
  %282 = vmatprep.subr.bf16.mxu0 0
  %283 = vmatpush2.bf16.msra.mxu0 0
  %284 = vmatprep.subr.bf16.mxu0 0
  %285 = vmatpush2.bf16.msra.mxu0 0
  %286 = vmatprep.subr.bf16.mxu0 0
  %287 = vmatpush2.bf16.msra.mxu0 0
  %288 = vmatprep.subr.bf16.mxu0 0
  %289 = vmatpush2.bf16.msra.mxu0 0
  %290 = vmatprep.subr.bf16.mxu0 0
  %291 = vmatpush2.bf16.msra.mxu0 0
  %292 = vmatprep.subr.bf16.mxu0 0
  %293 = vmatpush2.bf16.msra.mxu0 0
  %294 = vmatprep.subr.bf16.mxu0 0
  %295 = vmatpush2.bf16.msra.mxu0 0
  %296 = vmatprep.mubr.bf16.mxu0 0
  %297 = vmatmul.mubr.bf16.gmra.mxu0 %v262
  %v298 = vpop.f32.mrf.mxu0
  %v299 = vadd.f32 0.0, %v298
  %v300 = vpop.f32.mrf.mxu0
  %v301 = vpop.f32.mrf.mxu0
  %v302 = vadd.f32 0.0, %v301
  %v303 = vpop.f32.mrf.mxu0
  %304 = vdwg.mxu0
  %v305 = vadd.f32 %v246, %v299
  %v306 = vadd.f32 %v247, %v302
  %v307 = vxor.u32 %v305, 2147483648
  %v308 = vxor.u32 %v306, 2147483648
  %v309 = vmul.f32 %v307, 1.442695
  %v310 = vpow.pop %v309
  %v311 = vmul.f32 %v308, 1.442695
  %v312 = vpow.pop %v311
  %v313 = vadd.f32 %v310, 1.0
  %v314 = vadd.f32 %v312, 1.0
  %v315 = vrcp.pop %v313
  %v316 = vmul.f32 1.0, %v315
  %v317 = vrcp.pop %v314
  %v318 = vmul.f32 1.0, %v317
  %v319 = vtanh.pop %v305
  %v320 = vtanh.pop %v306
  %v321 = vmul.f32 %v316, 0.0
  %v322 = vmul.f32 %v318, 0.0
  %325 = vrot.lane.b32.xlu0 %v319, 32
  %v326 = vpop.permute.xlu0 %325
  %327 = vrot.lane.b32.xlu0 %v320, 32
  %v328 = vpop.permute.xlu0 %327
  %v331 = vmul.f32 %v316, %v326
  %v332 = vmul.f32 %v318, %v328
  %335 = vrot.lane.b32.xlu0 %v331, 32
  %v336 = vpop.permute.xlu0 %335
  %337 = vrot.lane.b32.xlu0 %v332, 32
  %v338 = vpop.permute.xlu0 %337
  %v341 = vadd.f32 %v321, %v336
  %v342 = vadd.f32 %v322, %v338
  %v343 = vtanh.pop %v341
  %v344 = vtanh.pop %v342
  %347 = vrot.lane.b32.xlu0 %v343, 32
  %v348 = vpop.permute.xlu0 %347
  %349 = vrot.lane.b32.xlu0 %v344, 32
  %v350 = vpop.permute.xlu0 %349
  %v353 = vmul.f32 %v316, %v348
  %v354 = vmul.f32 %v318, %v350
  %v355 = vpack.c.bf16 %v354, %v353
  %v357 = vunpack.c.l.b16 %v355
  %v358 = vunpack.c.h.b16 %v355
  %v359 = vpack.c.b16 %v357, %v357
  %v360 = vpack.c.b16 %v358, %v358
  %361 = vrot.lane.b32.xlu0 %v359, 64
  %v362 = vpop.permute.xlu0 %361
  %363 = vrot.lane.b32.xlu0 %v360, 64
  %v364 = vpop.permute.xlu0 %363
  %vm367 = vcmask 257024
  %368 = vst.msk [vmem:[#allocation3] sm:$0xf] %vm367, %v362
  %369 = vst.msk [vmem:[#allocation3 + $0x4] sm:$0xf] %vm367, %v364
  %v370 = vld [vmem:[#allocation2 + $0x10] sm:$0xff]
  %v371 = vld [vmem:[#allocation2 + $0x18] sm:$0xff]
  %372 = vrot.lane.b32.xlu0 %v355, 64
  %v373 = vpop.permute.xlu0 %372
  %v375 = vsel %vm260, %v373, 0
  %377 = vmatprep.subr.bf16.mxu0 0
  %378 = vmatpush1.bf16.msra.mxu0 0
  %379 = vmatprep.subr.bf16.mxu0 0
  %380 = vmatpush1.bf16.msra.mxu0 0
  %381 = vmatprep.subr.bf16.mxu0 0
  %382 = vmatpush1.bf16.msra.mxu0 0
  %383 = vmatprep.subr.bf16.mxu0 0
  %384 = vmatpush1.bf16.msra.mxu0 0
  %385 = vmatprep.subr.bf16.mxu0 0
  %386 = vmatpush1.bf16.msra.mxu0 0
  %387 = vmatprep.subr.bf16.mxu0 0
  %388 = vmatpush1.bf16.msra.mxu0 0
  %389 = vmatprep.subr.bf16.mxu0 0
  %390 = vmatpush1.bf16.msra.mxu0 %v257
  %391 = vmatprep.subr.bf16.mxu0 0
  %392 = vmatpush1.bf16.msra.mxu0 %v256
  %393 = vmatprep.subr.bf16.mxu0 0
  %394 = vmatpush2.bf16.msra.mxu0 0
  %395 = vmatprep.subr.bf16.mxu0 0
  %396 = vmatpush2.bf16.msra.mxu0 0
  %397 = vmatprep.subr.bf16.mxu0 0
  %398 = vmatpush2.bf16.msra.mxu0 0
  %399 = vmatprep.subr.bf16.mxu0 0
  %400 = vmatpush2.bf16.msra.mxu0 0
  %401 = vmatprep.subr.bf16.mxu0 0
  %402 = vmatpush2.bf16.msra.mxu0 0
  %403 = vmatprep.subr.bf16.mxu0 0
  %404 = vmatpush2.bf16.msra.mxu0 0
  %405 = vmatprep.subr.bf16.mxu0 0
  %406 = vmatpush2.bf16.msra.mxu0 0
  %407 = vmatprep.subr.bf16.mxu0 0
  %408 = vmatpush2.bf16.msra.mxu0 0
  %409 = vmatprep.mubr.bf16.mxu0 0
  %410 = vmatmul.mubr.bf16.gmra.mxu0 %v375
  %v411 = vpop.f32.mrf.mxu0
  %v412 = vadd.f32 0.0, %v411
  %v413 = vpop.f32.mrf.mxu0
  %v414 = vpop.f32.mrf.mxu0
  %v415 = vadd.f32 0.0, %v414
  %v416 = vpop.f32.mrf.mxu0
  %417 = vdwg.mxu0
  %v418 = vadd.f32 %v370, %v412
  %v419 = vadd.f32 %v371, %v415
  %v420 = vxor.u32 %v418, 2147483648
  %v421 = vxor.u32 %v419, 2147483648
  %v422 = vmul.f32 %v420, 1.442695
  %v423 = vpow.pop %v422
  %v424 = vmul.f32 %v421, 1.442695
  %v425 = vpow.pop %v424
  %v426 = vadd.f32 %v423, 1.0
  %v427 = vadd.f32 %v425, 1.0
  %v428 = vrcp.pop %v426
  %v429 = vmul.f32 1.0, %v428
  %v430 = vrcp.pop %v427
  %v431 = vmul.f32 1.0, %v430
  %v432 = vtanh.pop %v418
  %v433 = vtanh.pop %v419
  %v434 = vmul.f32 %v429, %v341
  %v435 = vmul.f32 %v431, %v342
  %438 = vrot.lane.b32.xlu0 %v432, 32
  %v439 = vpop.permute.xlu0 %438
  %440 = vrot.lane.b32.xlu0 %v433, 32
  %v441 = vpop.permute.xlu0 %440
  %v444 = vmul.f32 %v429, %v439
  %v445 = vmul.f32 %v431, %v441
  %448 = vrot.lane.b32.xlu0 %v444, 32
  %v449 = vpop.permute.xlu0 %448
  %450 = vrot.lane.b32.xlu0 %v445, 32
  %v451 = vpop.permute.xlu0 %450
  %v454 = vadd.f32 %v434, %v449
  %v455 = vadd.f32 %v435, %v451
  %v456 = vtanh.pop %v454
  %v457 = vtanh.pop %v455
  %460 = vrot.lane.b32.xlu0 %v456, 32
  %v461 = vpop.permute.xlu0 %460
  %462 = vrot.lane.b32.xlu0 %v457, 32
  %v463 = vpop.permute.xlu0 %462
  %v466 = vmul.f32 %v429, %v461
  %v467 = vmul.f32 %v431, %v463
  %v468 = vpack.c.bf16 %v467, %v466
  %v470 = vunpack.c.l.b16 %v468
  %v471 = vunpack.c.h.b16 %v468
  %v472 = vpack.c.b16 %v470, %v470
  %v473 = vpack.c.b16 %v471, %v471
  %474 = vrot.lane.b32.xlu0 %v472, 64
  %v475 = vpop.permute.xlu0 %474
  %476 = vrot.lane.b32.xlu0 %v473, 64
  %v477 = vpop.permute.xlu0 %476
  %480 = vst.msk [vmem:[#allocation3 + $0x8] sm:$0xf] %vm367, %v475
  %481 = vst.msk [vmem:[#allocation3 + $0xc] sm:$0xf] %vm367, %v477
  %v482 = vld [vmem:[#allocation2 + $0x20] sm:$0xff]
  %v483 = vld [vmem:[#allocation2 + $0x28] sm:$0xff]
  %484 = vrot.lane.b32.xlu0 %v468, 64
  %v485 = vpop.permute.xlu0 %484
  %v487 = vsel %vm260, %v485, 0
  %489 = vmatprep.subr.bf16.mxu0 0
  %490 = vmatpush1.bf16.msra.mxu0 0
  %491 = vmatprep.subr.bf16.mxu0 0
  %492 = vmatpush1.bf16.msra.mxu0 0
  %493 = vmatprep.subr.bf16.mxu0 0
  %494 = vmatpush1.bf16.msra.mxu0 0
  %495 = vmatprep.subr.bf16.mxu0 0
  %496 = vmatpush1.bf16.msra.mxu0 0
  %497 = vmatprep.subr.bf16.mxu0 0
  %498 = vmatpush1.bf16.msra.mxu0 0
  %499 = vmatprep.subr.bf16.mxu0 0
  %500 = vmatpush1.bf16.msra.mxu0 0
  %501 = vmatprep.subr.bf16.mxu0 0
  %502 = vmatpush1.bf16.msra.mxu0 %v257
  %503 = vmatprep.subr.bf16.mxu0 0
  %504 = vmatpush1.bf16.msra.mxu0 %v256
  %505 = vmatprep.subr.bf16.mxu0 0
  %506 = vmatpush2.bf16.msra.mxu0 0
  %507 = vmatprep.subr.bf16.mxu0 0
  %508 = vmatpush2.bf16.msra.mxu0 0
  %509 = vmatprep.subr.bf16.mxu0 0
  %510 = vmatpush2.bf16.msra.mxu0 0
  %511 = vmatprep.subr.bf16.mxu0 0
  %512 = vmatpush2.bf16.msra.mxu0 0
  %513 = vmatprep.subr.bf16.mxu0 0
  %514 = vmatpush2.bf16.msra.mxu0 0
  %515 = vmatprep.subr.bf16.mxu0 0
  %516 = vmatpush2.bf16.msra.mxu0 0
  %517 = vmatprep.subr.bf16.mxu0 0
  %518 = vmatpush2.bf16.msra.mxu0 0
  %519 = vmatprep.subr.bf16.mxu0 0
  %520 = vmatpush2.bf16.msra.mxu0 0
  %521 = vmatprep.mubr.bf16.mxu0 0
  %522 = vmatmul.mubr.bf16.gmra.mxu0 %v487
  %v523 = vpop.f32.mrf.mxu0
  %v524 = vadd.f32 0.0, %v523
  %v525 = vpop.f32.mrf.mxu0
  %v526 = vpop.f32.mrf.mxu0
  %v527 = vadd.f32 0.0, %v526
  %v528 = vpop.f32.mrf.mxu0
  %529 = vdwg.mxu0
  %v530 = vadd.f32 %v482, %v524
  %v531 = vadd.f32 %v483, %v527
  %v532 = vxor.u32 %v530, 2147483648
  %v533 = vxor.u32 %v531, 2147483648
  %v534 = vmul.f32 %v532, 1.442695
  %v535 = vpow.pop %v534
  %v536 = vmul.f32 %v533, 1.442695
  %v537 = vpow.pop %v536
  %v538 = vadd.f32 %v535, 1.0
  %v539 = vadd.f32 %v537, 1.0
  %v540 = vrcp.pop %v538
  %v541 = vmul.f32 1.0, %v540
  %v542 = vrcp.pop %v539
  %v543 = vmul.f32 1.0, %v542
  %v544 = vtanh.pop %v530
  %v545 = vtanh.pop %v531
  %v546 = vmul.f32 %v541, %v454
  %v547 = vmul.f32 %v543, %v455
  %550 = vrot.lane.b32.xlu0 %v544, 32
  %v551 = vpop.permute.xlu0 %550
  %552 = vrot.lane.b32.xlu0 %v545, 32
  %v553 = vpop.permute.xlu0 %552
  %v556 = vmul.f32 %v541, %v551
  %v557 = vmul.f32 %v543, %v553
  %560 = vrot.lane.b32.xlu0 %v556, 32
  %v561 = vpop.permute.xlu0 %560
  %562 = vrot.lane.b32.xlu0 %v557, 32
  %v563 = vpop.permute.xlu0 %562
  %v566 = vadd.f32 %v546, %v561
  %v567 = vadd.f32 %v547, %v563
  %v568 = vtanh.pop %v566
  %v569 = vtanh.pop %v567
  %572 = vrot.lane.b32.xlu0 %v568, 32
  %v573 = vpop.permute.xlu0 %572
  %574 = vrot.lane.b32.xlu0 %v569, 32
  %v575 = vpop.permute.xlu0 %574
  %v578 = vmul.f32 %v541, %v573
  %v579 = vmul.f32 %v543, %v575
  %v580 = vpack.c.bf16 %v579, %v578
  %v582 = vunpack.c.l.b16 %v580
  %v583 = vunpack.c.h.b16 %v580
  %v584 = vpack.c.b16 %v582, %v582
  %v585 = vpack.c.b16 %v583, %v583
  %586 = vrot.lane.b32.xlu0 %v584, 64
  %v587 = vpop.permute.xlu0 %586
  %588 = vrot.lane.b32.xlu0 %v585, 64
  %v589 = vpop.permute.xlu0 %588
  %592 = vst.msk [vmem:[#allocation3 + $0x10] sm:$0xf] %vm367, %v587
  %593 = vst.msk [vmem:[#allocation3 + $0x14] sm:$0xf] %vm367, %v589
  %v594 = vld [vmem:[#allocation2 + $0x30] sm:$0xff]
  %v595 = vld [vmem:[#allocation2 + $0x38] sm:$0xff]
  %596 = vrot.lane.b32.xlu0 %v580, 64
  %v597 = vpop.permute.xlu0 %596
  %v599 = vsel %vm260, %v597, 0
  %601 = vmatprep.subr.bf16.mxu0 0
  %602 = vmatpush1.bf16.msra.mxu0 0
  %603 = vmatprep.subr.bf16.mxu0 0
  %604 = vmatpush1.bf16.msra.mxu0 0
  %605 = vmatprep.subr.bf16.mxu0 0
  %606 = vmatpush1.bf16.msra.mxu0 0
  %607 = vmatprep.subr.bf16.mxu0 0
  %608 = vmatpush1.bf16.msra.mxu0 0
  %609 = vmatprep.subr.bf16.mxu0 0
  %610 = vmatpush1.bf16.msra.mxu0 0
  %611 = vmatprep.subr.bf16.mxu0 0
  %612 = vmatpush1.bf16.msra.mxu0 0
  %613 = vmatprep.subr.bf16.mxu0 0
  %614 = vmatpush1.bf16.msra.mxu0 %v257
  %615 = vmatprep.subr.bf16.mxu0 0
  %616 = vmatpush1.bf16.msra.mxu0 %v256
  %617 = vmatprep.subr.bf16.mxu0 0
  %618 = vmatpush2.bf16.msra.mxu0 0
  %619 = vmatprep.subr.bf16.mxu0 0
  %620 = vmatpush2.bf16.msra.mxu0 0
  %621 = vmatprep.subr.bf16.mxu0 0
  %622 = vmatpush2.bf16.msra.mxu0 0
  %623 = vmatprep.subr.bf16.mxu0 0
  %624 = vmatpush2.bf16.msra.mxu0 0
  %625 = vmatprep.subr.bf16.mxu0 0
  %626 = vmatpush2.bf16.msra.mxu0 0
  %627 = vmatprep.subr.bf16.mxu0 0
  %628 = vmatpush2.bf16.msra.mxu0 0
  %629 = vmatprep.subr.bf16.mxu0 0
  %630 = vmatpush2.bf16.msra.mxu0 0
  %631 = vmatprep.subr.bf16.mxu0 0
  %632 = vmatpush2.bf16.msra.mxu0 0
  %633 = vmatprep.mubr.bf16.mxu0 0
  %634 = vmatmul.mubr.bf16.gmra.mxu0 %v599
  %v635 = vpop.f32.mrf.mxu0
  %v636 = vadd.f32 0.0, %v635
  %v637 = vpop.f32.mrf.mxu0
  %v638 = vpop.f32.mrf.mxu0
  %v639 = vadd.f32 0.0, %v638
  %v640 = vpop.f32.mrf.mxu0
  %641 = vdwg.mxu0
  %v642 = vadd.f32 %v594, %v636
  %v643 = vadd.f32 %v595, %v639
  %v644 = vxor.u32 %v642, 2147483648
  %v645 = vxor.u32 %v643, 2147483648
  %v646 = vmul.f32 %v644, 1.442695
  %v647 = vpow.pop %v646
  %v648 = vmul.f32 %v645, 1.442695
  %v649 = vpow.pop %v648
  %v650 = vadd.f32 %v647, 1.0
  %v651 = vadd.f32 %v649, 1.0
  %v652 = vrcp.pop %v650
  %v653 = vmul.f32 1.0, %v652
  %v654 = vrcp.pop %v651
  %v655 = vmul.f32 1.0, %v654
  %v656 = vtanh.pop %v642
  %v657 = vtanh.pop %v643
  %v658 = vmul.f32 %v653, %v566
  %v659 = vmul.f32 %v655, %v567
  %662 = vrot.lane.b32.xlu0 %v656, 32
  %v663 = vpop.permute.xlu0 %662
  %664 = vrot.lane.b32.xlu0 %v657, 32
  %v665 = vpop.permute.xlu0 %664
  %v668 = vmul.f32 %v653, %v663
  %v669 = vmul.f32 %v655, %v665
  %672 = vrot.lane.b32.xlu0 %v668, 32
  %v673 = vpop.permute.xlu0 %672
  %674 = vrot.lane.b32.xlu0 %v669, 32
  %v675 = vpop.permute.xlu0 %674
  %v678 = vadd.f32 %v658, %v673
  %v679 = vadd.f32 %v659, %v675
  %v680 = vtanh.pop %v678
  %v681 = vtanh.pop %v679
  %684 = vrot.lane.b32.xlu0 %v680, 32
  %v685 = vpop.permute.xlu0 %684
  %686 = vrot.lane.b32.xlu0 %v681, 32
  %v687 = vpop.permute.xlu0 %686
  %v690 = vmul.f32 %v653, %v685
  %v691 = vmul.f32 %v655, %v687
  %v692 = vpack.c.bf16 %v691, %v690
  %v694 = vunpack.c.l.b16 %v692
  %v695 = vunpack.c.h.b16 %v692
  %v696 = vpack.c.b16 %v694, %v694
  %v697 = vpack.c.b16 %v695, %v695
  %698 = vrot.lane.b32.xlu0 %v696, 64
  %v699 = vpop.permute.xlu0 %698
  %700 = vrot.lane.b32.xlu0 %v697, 64
  %v701 = vpop.permute.xlu0 %700
  %704 = vst.msk [vmem:[#allocation3 + $0x18] sm:$0xf] %vm367, %v699
  %705 = vst.msk [vmem:[#allocation3 + $0x1c] sm:$0xf] %vm367, %v701
  %v706 = vld [vmem:[#allocation2 + $0x40] sm:$0xff]
  %v707 = vld [vmem:[#allocation2 + $0x48] sm:$0xff]
  %708 = vrot.lane.b32.xlu0 %v692, 64
  %v709 = vpop.permute.xlu0 %708
  %v711 = vsel %vm260, %v709, 0
  %713 = vmatprep.subr.bf16.mxu0 0
  %714 = vmatpush1.bf16.msra.mxu0 0
  %715 = vmatprep.subr.bf16.mxu0 0
  %716 = vmatpush1.bf16.msra.mxu0 0
  %717 = vmatprep.subr.bf16.mxu0 0
  %718 = vmatpush1.bf16.msra.mxu0 0
  %719 = vmatprep.subr.bf16.mxu0 0
  %720 = vmatpush1.bf16.msra.mxu0 0
  %721 = vmatprep.subr.bf16.mxu0 0
  %722 = vmatpush1.bf16.msra.mxu0 0
  %723 = vmatprep.subr.bf16.mxu0 0
  %724 = vmatpush1.bf16.msra.mxu0 0
  %725 = vmatprep.subr.bf16.mxu0 0
  %726 = vmatpush1.bf16.msra.mxu0 %v257
  %727 = vmatprep.subr.bf16.mxu0 0
  %728 = vmatpush1.bf16.msra.mxu0 %v256
  %729 = vmatprep.subr.bf16.mxu0 0
  %730 = vmatpush2.bf16.msra.mxu0 0
  %731 = vmatprep.subr.bf16.mxu0 0
  %732 = vmatpush2.bf16.msra.mxu0 0
  %733 = vmatprep.subr.bf16.mxu0 0
  %734 = vmatpush2.bf16.msra.mxu0 0
  %735 = vmatprep.subr.bf16.mxu0 0
  %736 = vmatpush2.bf16.msra.mxu0 0
  %737 = vmatprep.subr.bf16.mxu0 0
  %738 = vmatpush2.bf16.msra.mxu0 0
  %739 = vmatprep.subr.bf16.mxu0 0
  %740 = vmatpush2.bf16.msra.mxu0 0
  %741 = vmatprep.subr.bf16.mxu0 0
  %742 = vmatpush2.bf16.msra.mxu0 0
  %743 = vmatprep.subr.bf16.mxu0 0
  %744 = vmatpush2.bf16.msra.mxu0 0
  %745 = vmatprep.mubr.bf16.mxu0 0
  %746 = vmatmul.mubr.bf16.gmra.mxu0 %v711
  %v747 = vpop.f32.mrf.mxu0
  %v748 = vadd.f32 0.0, %v747
  %v749 = vpop.f32.mrf.mxu0
  %v750 = vpop.f32.mrf.mxu0
  %v751 = vadd.f32 0.0, %v750
  %v752 = vpop.f32.mrf.mxu0
  %753 = vdwg.mxu0
  %v754 = vadd.f32 %v706, %v748
  %v755 = vadd.f32 %v707, %v751
  %v756 = vxor.u32 %v754, 2147483648
  %v757 = vxor.u32 %v755, 2147483648
  %v758 = vmul.f32 %v756, 1.442695
  %v759 = vpow.pop %v758
  %v760 = vmul.f32 %v757, 1.442695
  %v761 = vpow.pop %v760
  %v762 = vadd.f32 %v759, 1.0
  %v763 = vadd.f32 %v761, 1.0
  %v764 = vrcp.pop %v762
  %v765 = vmul.f32 1.0, %v764
  %v766 = vrcp.pop %v763
  %v767 = vmul.f32 1.0, %v766
  %v768 = vtanh.pop %v754
  %v769 = vtanh.pop %v755
  %v770 = vmul.f32 %v765, %v678
  %v771 = vmul.f32 %v767, %v679
  %774 = vrot.lane.b32.xlu0 %v768, 32
  %v775 = vpop.permute.xlu0 %774
  %776 = vrot.lane.b32.xlu0 %v769, 32
  %v777 = vpop.permute.xlu0 %776
  %v780 = vmul.f32 %v765, %v775
  %v781 = vmul.f32 %v767, %v777
  %784 = vrot.lane.b32.xlu0 %v780, 32
  %v785 = vpop.permute.xlu0 %784
  %786 = vrot.lane.b32.xlu0 %v781, 32
  %v787 = vpop.permute.xlu0 %786
  %v790 = vadd.f32 %v770, %v785
  %v791 = vadd.f32 %v771, %v787
  %v792 = vtanh.pop %v790
  %v793 = vtanh.pop %v791
  %796 = vrot.lane.b32.xlu0 %v792, 32
  %v797 = vpop.permute.xlu0 %796
  %798 = vrot.lane.b32.xlu0 %v793, 32
  %v799 = vpop.permute.xlu0 %798
  %v802 = vmul.f32 %v765, %v797
  %v803 = vmul.f32 %v767, %v799
  %v804 = vpack.c.bf16 %v803, %v802
  %v806 = vunpack.c.l.b16 %v804
  %v807 = vunpack.c.h.b16 %v804
  %v808 = vpack.c.b16 %v806, %v806
  %v809 = vpack.c.b16 %v807, %v807
  %810 = vrot.lane.b32.xlu0 %v808, 64
  %v811 = vpop.permute.xlu0 %810
  %812 = vrot.lane.b32.xlu0 %v809, 64
  %v813 = vpop.permute.xlu0 %812
  %816 = vst.msk [vmem:[#allocation3 + $0x20] sm:$0xf] %vm367, %v811
  %817 = vst.msk [vmem:[#allocation3 + $0x24] sm:$0xf] %vm367, %v813
  %v818 = vld [vmem:[#allocation2 + $0x50] sm:$0xff]
  %v819 = vld [vmem:[#allocation2 + $0x58] sm:$0xff]
  %820 = vrot.lane.b32.xlu0 %v804, 64
  %v821 = vpop.permute.xlu0 %820
  %v823 = vsel %vm260, %v821, 0
  %825 = vmatprep.subr.bf16.mxu0 0
  %826 = vmatpush1.bf16.msra.mxu0 0
  %827 = vmatprep.subr.bf16.mxu0 0
  %828 = vmatpush1.bf16.msra.mxu0 0
  %829 = vmatprep.subr.bf16.mxu0 0
  %830 = vmatpush1.bf16.msra.mxu0 0
  %831 = vmatprep.subr.bf16.mxu0 0
  %832 = vmatpush1.bf16.msra.mxu0 0
  %833 = vmatprep.subr.bf16.mxu0 0
  %834 = vmatpush1.bf16.msra.mxu0 0
  %835 = vmatprep.subr.bf16.mxu0 0
  %836 = vmatpush1.bf16.msra.mxu0 0
  %837 = vmatprep.subr.bf16.mxu0 0
  %838 = vmatpush1.bf16.msra.mxu0 %v257
  %839 = vmatprep.subr.bf16.mxu0 0
  %840 = vmatpush1.bf16.msra.mxu0 %v256
  %841 = vmatprep.subr.bf16.mxu0 0
  %842 = vmatpush2.bf16.msra.mxu0 0
  %843 = vmatprep.subr.bf16.mxu0 0
  %844 = vmatpush2.bf16.msra.mxu0 0
  %845 = vmatprep.subr.bf16.mxu0 0
  %846 = vmatpush2.bf16.msra.mxu0 0
  %847 = vmatprep.subr.bf16.mxu0 0
  %848 = vmatpush2.bf16.msra.mxu0 0
  %849 = vmatprep.subr.bf16.mxu0 0
  %850 = vmatpush2.bf16.msra.mxu0 0
  %851 = vmatprep.subr.bf16.mxu0 0
  %852 = vmatpush2.bf16.msra.mxu0 0
  %853 = vmatprep.subr.bf16.mxu0 0
  %854 = vmatpush2.bf16.msra.mxu0 0
  %855 = vmatprep.subr.bf16.mxu0 0
  %856 = vmatpush2.bf16.msra.mxu0 0
  %857 = vmatprep.mubr.bf16.mxu0 0
  %858 = vmatmul.mubr.bf16.gmra.mxu0 %v823
  %v859 = vpop.f32.mrf.mxu0
  %v860 = vadd.f32 0.0, %v859
  %v861 = vpop.f32.mrf.mxu0
  %v862 = vpop.f32.mrf.mxu0
  %v863 = vadd.f32 0.0, %v862
  %v864 = vpop.f32.mrf.mxu0
  %865 = vdwg.mxu0
  %v866 = vadd.f32 %v818, %v860
  %v867 = vadd.f32 %v819, %v863
  %v868 = vxor.u32 %v866, 2147483648
  %v869 = vxor.u32 %v867, 2147483648
  %v870 = vmul.f32 %v868, 1.442695
  %v871 = vpow.pop %v870
  %v872 = vmul.f32 %v869, 1.442695
  %v873 = vpow.pop %v872
  %v874 = vadd.f32 %v871, 1.0
  %v875 = vadd.f32 %v873, 1.0
  %v876 = vrcp.pop %v874
  %v877 = vmul.f32 1.0, %v876
  %v878 = vrcp.pop %v875
  %v879 = vmul.f32 1.0, %v878
  %v880 = vtanh.pop %v866
  %v881 = vtanh.pop %v867
  %v882 = vmul.f32 %v877, %v790
  %v883 = vmul.f32 %v879, %v791
  %886 = vrot.lane.b32.xlu0 %v880, 32
  %v887 = vpop.permute.xlu0 %886
  %888 = vrot.lane.b32.xlu0 %v881, 32
  %v889 = vpop.permute.xlu0 %888
  %v892 = vmul.f32 %v877, %v887
  %v893 = vmul.f32 %v879, %v889
  %896 = vrot.lane.b32.xlu0 %v892, 32
  %v897 = vpop.permute.xlu0 %896
  %898 = vrot.lane.b32.xlu0 %v893, 32
  %v899 = vpop.permute.xlu0 %898
  %v902 = vadd.f32 %v882, %v897
  %v903 = vadd.f32 %v883, %v899
  %v904 = vtanh.pop %v902
  %v905 = vtanh.pop %v903
  %908 = vrot.lane.b32.xlu0 %v904, 32
  %v909 = vpop.permute.xlu0 %908
  %910 = vrot.lane.b32.xlu0 %v905, 32
  %v911 = vpop.permute.xlu0 %910
  %v914 = vmul.f32 %v877, %v909
  %v915 = vmul.f32 %v879, %v911
  %v916 = vpack.c.bf16 %v915, %v914
  %v918 = vunpack.c.l.b16 %v916
  %v919 = vunpack.c.h.b16 %v916
  %v920 = vpack.c.b16 %v918, %v918
  %v921 = vpack.c.b16 %v919, %v919
  %922 = vrot.lane.b32.xlu0 %v920, 64
  %v923 = vpop.permute.xlu0 %922
  %924 = vrot.lane.b32.xlu0 %v921, 64
  %v925 = vpop.permute.xlu0 %924
  %928 = vst.msk [vmem:[#allocation3 + $0x28] sm:$0xf] %vm367, %v923
  %929 = vst.msk [vmem:[#allocation3 + $0x2c] sm:$0xf] %vm367, %v925
  %v930 = vld [vmem:[#allocation2 + $0x60] sm:$0xff]
  %v931 = vld [vmem:[#allocation2 + $0x68] sm:$0xff]
  %932 = vrot.lane.b32.xlu0 %v916, 64
  %v933 = vpop.permute.xlu0 %932
  %v935 = vsel %vm260, %v933, 0
  %937 = vmatprep.subr.bf16.mxu0 0
  %938 = vmatpush1.bf16.msra.mxu0 0
  %939 = vmatprep.subr.bf16.mxu0 0
  %940 = vmatpush1.bf16.msra.mxu0 0
  %941 = vmatprep.subr.bf16.mxu0 0
  %942 = vmatpush1.bf16.msra.mxu0 0
  %943 = vmatprep.subr.bf16.mxu0 0
  %944 = vmatpush1.bf16.msra.mxu0 0
  %945 = vmatprep.subr.bf16.mxu0 0
  %946 = vmatpush1.bf16.msra.mxu0 0
  %947 = vmatprep.subr.bf16.mxu0 0
  %948 = vmatpush1.bf16.msra.mxu0 0
  %949 = vmatprep.subr.bf16.mxu0 0
  %950 = vmatpush1.bf16.msra.mxu0 %v257
  %951 = vmatprep.subr.bf16.mxu0 0
  %952 = vmatpush1.bf16.msra.mxu0 %v256
  %953 = vmatprep.subr.bf16.mxu0 0
  %954 = vmatpush2.bf16.msra.mxu0 0
  %955 = vmatprep.subr.bf16.mxu0 0
  %956 = vmatpush2.bf16.msra.mxu0 0
  %957 = vmatprep.subr.bf16.mxu0 0
  %958 = vmatpush2.bf16.msra.mxu0 0
  %959 = vmatprep.subr.bf16.mxu0 0
  %960 = vmatpush2.bf16.msra.mxu0 0
  %961 = vmatprep.subr.bf16.mxu0 0
  %962 = vmatpush2.bf16.msra.mxu0 0
  %963 = vmatprep.subr.bf16.mxu0 0
  %964 = vmatpush2.bf16.msra.mxu0 0
  %965 = vmatprep.subr.bf16.mxu0 0
  %966 = vmatpush2.bf16.msra.mxu0 0
  %967 = vmatprep.subr.bf16.mxu0 0
  %968 = vmatpush2.bf16.msra.mxu0 0
  %969 = vmatprep.mubr.bf16.mxu0 0
  %970 = vmatmul.mubr.bf16.gmra.mxu0 %v935
  %v971 = vpop.f32.mrf.mxu0
  %v972 = vadd.f32 0.0, %v971
  %v973 = vpop.f32.mrf.mxu0
  %v974 = vpop.f32.mrf.mxu0
  %v975 = vadd.f32 0.0, %v974
  %v976 = vpop.f32.mrf.mxu0
  %977 = vdwg.mxu0
  %v978 = vadd.f32 %v930, %v972
  %v979 = vadd.f32 %v931, %v975
  %v980 = vxor.u32 %v978, 2147483648
  %v981 = vxor.u32 %v979, 2147483648
  %v982 = vmul.f32 %v980, 1.442695
  %v983 = vpow.pop %v982
  %v984 = vmul.f32 %v981, 1.442695
  %v985 = vpow.pop %v984
  %v986 = vadd.f32 %v983, 1.0
  %v987 = vadd.f32 %v985, 1.0
  %v988 = vrcp.pop %v986
  %v989 = vmul.f32 1.0, %v988
  %v990 = vrcp.pop %v987
  %v991 = vmul.f32 1.0, %v990
  %v992 = vtanh.pop %v978
  %v993 = vtanh.pop %v979
  %v994 = vmul.f32 %v989, %v902
  %v995 = vmul.f32 %v991, %v903
  %998 = vrot.lane.b32.xlu0 %v992, 32
  %v999 = vpop.permute.xlu0 %998
  %1000 = vrot.lane.b32.xlu0 %v993, 32
  %v1001 = vpop.permute.xlu0 %1000
  %v1004 = vmul.f32 %v989, %v999
  %v1005 = vmul.f32 %v991, %v1001
  %1008 = vrot.lane.b32.xlu0 %v1004, 32
  %v1009 = vpop.permute.xlu0 %1008
  %1010 = vrot.lane.b32.xlu0 %v1005, 32
  %v1011 = vpop.permute.xlu0 %1010
  %v1014 = vadd.f32 %v994, %v1009
  %v1015 = vadd.f32 %v995, %v1011
  %v1016 = vtanh.pop %v1014
  %v1017 = vtanh.pop %v1015
  %1020 = vrot.lane.b32.xlu0 %v1016, 32
  %v1021 = vpop.permute.xlu0 %1020
  %1022 = vrot.lane.b32.xlu0 %v1017, 32
  %v1023 = vpop.permute.xlu0 %1022
  %v1026 = vmul.f32 %v989, %v1021
  %v1027 = vmul.f32 %v991, %v1023
  %v1028 = vpack.c.bf16 %v1027, %v1026
  %v1030 = vunpack.c.l.b16 %v1028
  %v1031 = vunpack.c.h.b16 %v1028
  %v1032 = vpack.c.b16 %v1030, %v1030
  %v1033 = vpack.c.b16 %v1031, %v1031
  %1034 = vrot.lane.b32.xlu0 %v1032, 64
  %v1035 = vpop.permute.xlu0 %1034
  %1036 = vrot.lane.b32.xlu0 %v1033, 64
  %v1037 = vpop.permute.xlu0 %1036
  %1040 = vst.msk [vmem:[#allocation3 + $0x30] sm:$0xf] %vm367, %v1035
  %1041 = vst.msk [vmem:[#allocation3 + $0x34] sm:$0xf] %vm367, %v1037
  %v1042 = vld [vmem:[#allocation2 + $0x70] sm:$0xff]
  %v1043 = vld [vmem:[#allocation2 + $0x78] sm:$0xff]
  %1044 = vrot.lane.b32.xlu0 %v1028, 64
  %v1045 = vpop.permute.xlu0 %1044
  %v1047 = vsel %vm260, %v1045, 0
  %1049 = vmatprep.subr.bf16.mxu0 0
  %1050 = vmatpush1.bf16.msra.mxu0 0
  %1051 = vmatprep.subr.bf16.mxu0 0
  %1052 = vmatpush1.bf16.msra.mxu0 0
  %1053 = vmatprep.subr.bf16.mxu0 0
  %1054 = vmatpush1.bf16.msra.mxu0 0
  %1055 = vmatprep.subr.bf16.mxu0 0
  %1056 = vmatpush1.bf16.msra.mxu0 0
  %1057 = vmatprep.subr.bf16.mxu0 0
  %1058 = vmatpush1.bf16.msra.mxu0 0
  %1059 = vmatprep.subr.bf16.mxu0 0
  %1060 = vmatpush1.bf16.msra.mxu0 0
  %1061 = vmatprep.subr.bf16.mxu0 0
  %1062 = vmatpush1.bf16.msra.mxu0 %v257
  %1063 = vmatprep.subr.bf16.mxu0 0
  %1064 = vmatpush1.bf16.msra.mxu0 %v256
  %1065 = vmatprep.subr.bf16.mxu0 0
  %1066 = vmatpush2.bf16.msra.mxu0 0
  %1067 = vmatprep.subr.bf16.mxu0 0
  %1068 = vmatpush2.bf16.msra.mxu0 0
  %1069 = vmatprep.subr.bf16.mxu0 0
  %1070 = vmatpush2.bf16.msra.mxu0 0
  %1071 = vmatprep.subr.bf16.mxu0 0
  %1072 = vmatpush2.bf16.msra.mxu0 0
  %1073 = vmatprep.subr.bf16.mxu0 0
  %1074 = vmatpush2.bf16.msra.mxu0 0
  %1075 = vmatprep.subr.bf16.mxu0 0
  %1076 = vmatpush2.bf16.msra.mxu0 0
  %1077 = vmatprep.subr.bf16.mxu0 0
  %1078 = vmatpush2.bf16.msra.mxu0 0
  %1079 = vmatprep.subr.bf16.mxu0 0
  %1080 = vmatpush2.bf16.msra.mxu0 0
  %1081 = vmatprep.mubr.bf16.mxu0 0
  %1082 = vmatmul.mubr.bf16.gmra.mxu0 %v1047
  %v1083 = vpop.f32.mrf.mxu0
  %v1084 = vadd.f32 0.0, %v1083
  %v1085 = vpop.f32.mrf.mxu0
  %v1086 = vpop.f32.mrf.mxu0
  %v1087 = vadd.f32 0.0, %v1086
  %v1088 = vpop.f32.mrf.mxu0
  %1089 = vdwg.mxu0
  %v1090 = vadd.f32 %v1042, %v1084
  %v1091 = vadd.f32 %v1043, %v1087
  %v1092 = vxor.u32 %v1090, 2147483648
  %v1093 = vxor.u32 %v1091, 2147483648
  %v1094 = vmul.f32 %v1092, 1.442695
  %v1095 = vpow.pop %v1094
  %v1096 = vmul.f32 %v1093, 1.442695
  %v1097 = vpow.pop %v1096
  %v1098 = vadd.f32 %v1095, 1.0
  %v1099 = vadd.f32 %v1097, 1.0
  %v1100 = vrcp.pop %v1098
  %v1101 = vmul.f32 1.0, %v1100
  %v1102 = vrcp.pop %v1099
  %v1103 = vmul.f32 1.0, %v1102
  %v1104 = vtanh.pop %v1090
  %v1105 = vtanh.pop %v1091
  %v1106 = vmul.f32 %v1101, %v1014
  %v1107 = vmul.f32 %v1103, %v1015
  %1110 = vrot.lane.b32.xlu0 %v1104, 32
  %v1111 = vpop.permute.xlu0 %1110
  %1112 = vrot.lane.b32.xlu0 %v1105, 32
  %v1113 = vpop.permute.xlu0 %1112
  %v1116 = vmul.f32 %v1101, %v1111
  %v1117 = vmul.f32 %v1103, %v1113
  %1120 = vrot.lane.b32.xlu0 %v1116, 32
  %v1121 = vpop.permute.xlu0 %1120
  %1122 = vrot.lane.b32.xlu0 %v1117, 32
  %v1123 = vpop.permute.xlu0 %1122
  %v1126 = vadd.f32 %v1106, %v1121
  %v1127 = vadd.f32 %v1107, %v1123
  %v1128 = vtanh.pop %v1126
  %v1129 = vtanh.pop %v1127
  %1132 = vrot.lane.b32.xlu0 %v1128, 32
  %v1133 = vpop.permute.xlu0 %1132
  %1134 = vrot.lane.b32.xlu0 %v1129, 32
  %v1135 = vpop.permute.xlu0 %1134
  %v1138 = vmul.f32 %v1101, %v1133
  %v1139 = vmul.f32 %v1103, %v1135
  %v1140 = vpack.c.bf16 %v1139, %v1138
  %v1142 = vunpack.c.l.b16 %v1140
  %v1143 = vunpack.c.h.b16 %v1140
  %v1144 = vpack.c.b16 %v1142, %v1142
  %v1145 = vpack.c.b16 %v1143, %v1143
  %1146 = vrot.lane.b32.xlu0 %v1144, 64
  %v1147 = vpop.permute.xlu0 %1146
  %1148 = vrot.lane.b32.xlu0 %v1145, 64
  %v1149 = vpop.permute.xlu0 %1148
  %1152 = vst.msk [vmem:[#allocation3 + $0x38] sm:$0xf] %vm367, %v1147
  %1153 = vst.msk [vmem:[#allocation3 + $0x3c] sm:$0xf] %vm367, %v1149
  %v1154 = vld [vmem:[%s4] sm:$0xf]
  %v1155 = vld [vmem:[%s4 + $0x4] sm:$0xf]
  %v1156 = vld [vmem:[%s4 + $0x8] sm:$0xf]
  %v1157 = vld [vmem:[%s4 + $0xc] sm:$0xf]
  %v1158 = vld [vmem:[%s5] sm:$0xf]
  %v1159 = vld [vmem:[%s5 + $0x4] sm:$0xf]
  %v1160 = vld [vmem:[%s5 + $0x8] sm:$0xf]
  %v1161 = vld [vmem:[%s5 + $0xc] sm:$0xf]
  %v1162 = vld [vmem:[%s6] sm:$0x1]
  %v1163 = vld [vmem:[#allocation3] sm:$0xf]
  %v1164 = vld [vmem:[#allocation3 + $0x4] sm:$0xf]
  %v1165 = vld [vmem:[#allocation3 + $0x8] sm:$0xf]
  %v1166 = vld [vmem:[#allocation3 + $0xc] sm:$0xf]
  %v1167 = vld [vmem:[#allocation3 + $0x10] sm:$0xf]
  %v1168 = vld [vmem:[#allocation3 + $0x14] sm:$0xf]
  %v1169 = vld [vmem:[#allocation3 + $0x18] sm:$0xf]
  %v1170 = vld [vmem:[#allocation3 + $0x1c] sm:$0xf]
  %v1171 = vld [vmem:[#allocation3 + $0x20] sm:$0xf]
  %v1172 = vld [vmem:[#allocation3 + $0x24] sm:$0xf]
  %v1173 = vld [vmem:[#allocation3 + $0x28] sm:$0xf]
  %v1174 = vld [vmem:[#allocation3 + $0x2c] sm:$0xf]
  %v1175 = vld [vmem:[#allocation3 + $0x30] sm:$0xf]
  %v1176 = vld [vmem:[#allocation3 + $0x34] sm:$0xf]
  %v1177 = vld [vmem:[#allocation3 + $0x38] sm:$0xf]
  %v1178 = vld [vmem:[#allocation3 + $0x3c] sm:$0xf]
  %v1180 = vlaneseq
  %v1181 = vshrl.u32 %v1180, 7
  %v1182 = vsub.s32 0, %v1181
  %v1183 = vrot.slane %v1162, %v1182
  %v1201 = vunpack.c.l.b16 %v1163
  %v1202 = vunpack.c.l.b16 %v1164
  %v1203 = vunpack.c.l.b16 %v1165
  %v1204 = vunpack.c.l.b16 %v1166
  %v1205 = vunpack.c.l.b16 %v1167
  %v1206 = vunpack.c.l.b16 %v1168
  %v1207 = vunpack.c.l.b16 %v1169
  %v1208 = vunpack.c.l.b16 %v1170
  %v1209 = vunpack.c.l.b16 %v1171
  %v1210 = vunpack.c.l.b16 %v1172
  %v1211 = vunpack.c.l.b16 %v1173
  %v1212 = vunpack.c.l.b16 %v1174
  %v1213 = vunpack.c.l.b16 %v1175
  %v1214 = vunpack.c.l.b16 %v1176
  %v1215 = vunpack.c.l.b16 %v1177
  %v1216 = vunpack.c.l.b16 %v1178
  %v1217 = vpack.c.b16 %v1202, %v1201
  %v1218 = vpack.c.b16 %v1204, %v1203
  %v1219 = vpack.c.b16 %v1206, %v1205
  %v1220 = vpack.c.b16 %v1208, %v1207
  %v1221 = vpack.c.b16 %v1210, %v1209
  %v1222 = vpack.c.b16 %v1212, %v1211
  %v1223 = vpack.c.b16 %v1214, %v1213
  %v1224 = vpack.c.b16 %v1216, %v1215
  %v1229 = vunpack.c.l.b16 %v1154
  %v1230 = vunpack.c.l.b16 %v1155
  %v1231 = vunpack.c.l.b16 %v1156
  %v1232 = vunpack.c.l.b16 %v1157
  %v1233 = vpack.c.b16 %v1230, %v1229
  %v1234 = vpack.c.b16 %v1232, %v1231
  %v1238 = vsel %vm260, %v1217, 0
  %v1241 = vsel %vm260, %v1218, 0
  %v1244 = vsel %vm260, %v1219, 0
  %v1247 = vsel %vm260, %v1220, 0
  %v1250 = vsel %vm260, %v1221, 0
  %v1253 = vsel %vm260, %v1222, 0
  %v1256 = vsel %vm260, %v1223, 0
  %v1259 = vsel %vm260, %v1224, 0
  %1261 = vmatprep.subr.bf16.mxu0 0
  %1262 = vmatpush1.bf16.msra.mxu0 0
  %1263 = vmatprep.subr.bf16.mxu0 0
  %1264 = vmatpush1.bf16.msra.mxu0 0
  %1265 = vmatprep.subr.bf16.mxu0 0
  %1266 = vmatpush1.bf16.msra.mxu0 0
  %1267 = vmatprep.subr.bf16.mxu0 0
  %1268 = vmatpush1.bf16.msra.mxu0 0
  %1269 = vmatprep.subr.bf16.mxu0 0
  %1270 = vmatpush1.bf16.msra.mxu0 0
  %1271 = vmatprep.subr.bf16.mxu0 0
  %1272 = vmatpush1.bf16.msra.mxu0 0
  %1273 = vmatprep.subr.bf16.mxu0 0
  %1274 = vmatpush1.bf16.msra.mxu0 %v1234
  %1275 = vmatprep.subr.bf16.mxu0 0
  %1276 = vmatpush1.bf16.msra.mxu0 %v1233
  %1277 = vmatprep.subr.bf16.mxu0 0
  %1278 = vmatpush2.bf16.msra.mxu0 0
  %1279 = vmatprep.subr.bf16.mxu0 0
  %1280 = vmatpush2.bf16.msra.mxu0 0
  %1281 = vmatprep.subr.bf16.mxu0 0
  %1282 = vmatpush2.bf16.msra.mxu0 0
  %1283 = vmatprep.subr.bf16.mxu0 0
  %1284 = vmatpush2.bf16.msra.mxu0 0
  %1285 = vmatprep.subr.bf16.mxu0 0
  %1286 = vmatpush2.bf16.msra.mxu0 0
  %1287 = vmatprep.subr.bf16.mxu0 0
  %1288 = vmatpush2.bf16.msra.mxu0 0
  %1289 = vmatprep.subr.bf16.mxu0 0
  %1290 = vmatpush2.bf16.msra.mxu0 0
  %1291 = vmatprep.subr.bf16.mxu0 0
  %1292 = vmatpush2.bf16.msra.mxu0 0
  %1293 = vmatprep.mubr.bf16.mxu0 0
  %1294 = vmatmul.mubr.bf16.gmra.mxu0 %v1238
  %v1295 = vpop.f32.mrf.mxu0
  %v1296 = vadd.f32 %v1183, %v1295
  %v1297 = vpop.f32.mrf.mxu0
  %v1298 = vpop.f32.mrf.mxu0
  %v1299 = vadd.f32 %v1183, %v1298
  %v1300 = vpop.f32.mrf.mxu0
  %1301 = vmatprep.mubr.bf16.mxu0 0
  %1302 = vmatmul.mubr.bf16.gmra.mxu0 %v1241
  %v1303 = vpop.f32.mrf.mxu0
  %v1304 = vadd.f32 %v1183, %v1303
  %v1305 = vpop.f32.mrf.mxu0
  %v1306 = vpop.f32.mrf.mxu0
  %v1307 = vadd.f32 %v1183, %v1306
  %v1308 = vpop.f32.mrf.mxu0
  %1309 = vmatprep.mubr.bf16.mxu0 0
  %1310 = vmatmul.mubr.bf16.gmra.mxu0 %v1244
  %v1311 = vpop.f32.mrf.mxu0
  %v1312 = vadd.f32 %v1183, %v1311
  %v1313 = vpop.f32.mrf.mxu0
  %v1314 = vpop.f32.mrf.mxu0
  %v1315 = vadd.f32 %v1183, %v1314
  %v1316 = vpop.f32.mrf.mxu0
  %1317 = vmatprep.mubr.bf16.mxu0 0
  %1318 = vmatmul.mubr.bf16.gmra.mxu0 %v1247
  %v1319 = vpop.f32.mrf.mxu0
  %v1320 = vadd.f32 %v1183, %v1319
  %v1321 = vpop.f32.mrf.mxu0
  %v1322 = vpop.f32.mrf.mxu0
  %v1323 = vadd.f32 %v1183, %v1322
  %v1324 = vpop.f32.mrf.mxu0
  %1325 = vmatprep.mubr.bf16.mxu0 0
  %1326 = vmatmul.mubr.bf16.gmra.mxu0 %v1250
  %v1327 = vpop.f32.mrf.mxu0
  %v1328 = vadd.f32 %v1183, %v1327
  %v1329 = vpop.f32.mrf.mxu0
  %v1330 = vpop.f32.mrf.mxu0
  %v1331 = vadd.f32 %v1183, %v1330
  %v1332 = vpop.f32.mrf.mxu0
  %1333 = vmatprep.mubr.bf16.mxu0 0
  %1334 = vmatmul.mubr.bf16.gmra.mxu0 %v1253
  %v1335 = vpop.f32.mrf.mxu0
  %v1336 = vadd.f32 %v1183, %v1335
  %v1337 = vpop.f32.mrf.mxu0
  %v1338 = vpop.f32.mrf.mxu0
  %v1339 = vadd.f32 %v1183, %v1338
  %v1340 = vpop.f32.mrf.mxu0
  %1341 = vmatprep.mubr.bf16.mxu0 0
  %1342 = vmatmul.mubr.bf16.gmra.mxu0 %v1256
  %v1343 = vpop.f32.mrf.mxu0
  %v1344 = vadd.f32 %v1183, %v1343
  %v1345 = vpop.f32.mrf.mxu0
  %v1346 = vpop.f32.mrf.mxu0
  %v1347 = vadd.f32 %v1183, %v1346
  %v1348 = vpop.f32.mrf.mxu0
  %1349 = vmatprep.mubr.bf16.mxu0 0
  %1350 = vmatmul.mubr.bf16.gmra.mxu0 %v1259
  %v1351 = vpop.f32.mrf.mxu0
  %v1352 = vadd.f32 %v1183, %v1351
  %v1353 = vpop.f32.mrf.mxu0
  %v1354 = vpop.f32.mrf.mxu0
  %v1355 = vadd.f32 %v1183, %v1354
  %v1356 = vpop.f32.mrf.mxu0
  %1357 = vdwg.mxu0
  %1358 = vst [vmem:[#allocation2] sm:$0xff] %v1296
  %1359 = vst [vmem:[#allocation2 + $0x8] sm:$0xff] %v1299
  %1360 = vst [vmem:[#allocation2 + $0x10] sm:$0xff] %v1304
  %1361 = vst [vmem:[#allocation2 + $0x18] sm:$0xff] %v1307
  %1362 = vst [vmem:[#allocation2 + $0x20] sm:$0xff] %v1312
  %1363 = vst [vmem:[#allocation2 + $0x28] sm:$0xff] %v1315
  %1364 = vst [vmem:[#allocation2 + $0x30] sm:$0xff] %v1320
  %1365 = vst [vmem:[#allocation2 + $0x38] sm:$0xff] %v1323
  %1366 = vst [vmem:[#allocation2 + $0x40] sm:$0xff] %v1328
  %1367 = vst [vmem:[#allocation2 + $0x48] sm:$0xff] %v1331
  %1368 = vst [vmem:[#allocation2 + $0x50] sm:$0xff] %v1336
  %1369 = vst [vmem:[#allocation2 + $0x58] sm:$0xff] %v1339
  %1370 = vst [vmem:[#allocation2 + $0x60] sm:$0xff] %v1344
  %1371 = vst [vmem:[#allocation2 + $0x68] sm:$0xff] %v1347
  %1372 = vst [vmem:[#allocation2 + $0x70] sm:$0xff] %v1352
  %1373 = vst [vmem:[#allocation2 + $0x78] sm:$0xff] %v1355
  %v1374 = vld [vmem:[#allocation2] sm:$0xff]
  %v1375 = vld [vmem:[#allocation2 + $0x8] sm:$0xff]
  %v1380 = vunpack.c.l.b16 %v1158
  %v1381 = vunpack.c.l.b16 %v1159
  %v1382 = vunpack.c.l.b16 %v1160
  %v1383 = vunpack.c.l.b16 %v1161
  %v1384 = vpack.c.b16 %v1381, %v1380
  %v1385 = vpack.c.b16 %v1383, %v1382
  %1388 = vmatprep.subr.bf16.mxu0 0
  %1389 = vmatpush1.bf16.msra.mxu0 0
  %1390 = vmatprep.subr.bf16.mxu0 0
  %1391 = vmatpush1.bf16.msra.mxu0 0
  %1392 = vmatprep.subr.bf16.mxu0 0
  %1393 = vmatpush1.bf16.msra.mxu0 0
  %1394 = vmatprep.subr.bf16.mxu0 0
  %1395 = vmatpush1.bf16.msra.mxu0 0
  %1396 = vmatprep.subr.bf16.mxu0 0
  %1397 = vmatpush1.bf16.msra.mxu0 0
  %1398 = vmatprep.subr.bf16.mxu0 0
  %1399 = vmatpush1.bf16.msra.mxu0 0
  %1400 = vmatprep.subr.bf16.mxu0 0
  %1401 = vmatpush1.bf16.msra.mxu0 %v1385
  %1402 = vmatprep.subr.bf16.mxu0 0
  %1403 = vmatpush1.bf16.msra.mxu0 %v1384
  %1404 = vmatprep.subr.bf16.mxu0 0
  %1405 = vmatpush2.bf16.msra.mxu0 0
  %1406 = vmatprep.subr.bf16.mxu0 0
  %1407 = vmatpush2.bf16.msra.mxu0 0
  %1408 = vmatprep.subr.bf16.mxu0 0
  %1409 = vmatpush2.bf16.msra.mxu0 0
  %1410 = vmatprep.subr.bf16.mxu0 0
  %1411 = vmatpush2.bf16.msra.mxu0 0
  %1412 = vmatprep.subr.bf16.mxu0 0
  %1413 = vmatpush2.bf16.msra.mxu0 0
  %1414 = vmatprep.subr.bf16.mxu0 0
  %1415 = vmatpush2.bf16.msra.mxu0 0
  %1416 = vmatprep.subr.bf16.mxu0 0
  %1417 = vmatpush2.bf16.msra.mxu0 0
  %1418 = vmatprep.subr.bf16.mxu0 0
  %1419 = vmatpush2.bf16.msra.mxu0 0
  %1420 = vmatprep.mubr.bf16.mxu0 0
  %1421 = vmatmul.mubr.bf16.gmra.mxu0 %v262
  %v1422 = vpop.f32.mrf.mxu0
  %v1423 = vadd.f32 0.0, %v1422
  %v1424 = vpop.f32.mrf.mxu0
  %v1425 = vpop.f32.mrf.mxu0
  %v1426 = vadd.f32 0.0, %v1425
  %v1427 = vpop.f32.mrf.mxu0
  %1428 = vdwg.mxu0
  %v1429 = vadd.f32 %v1374, %v1423
  %v1430 = vadd.f32 %v1375, %v1426
  %v1431 = vxor.u32 %v1429, 2147483648
  %v1432 = vxor.u32 %v1430, 2147483648
  %v1433 = vmul.f32 %v1431, 1.442695
  %v1434 = vpow.pop %v1433
  %v1435 = vmul.f32 %v1432, 1.442695
  %v1436 = vpow.pop %v1435
  %v1437 = vadd.f32 %v1434, 1.0
  %v1438 = vadd.f32 %v1436, 1.0
  %v1439 = vrcp.pop %v1437
  %v1440 = vmul.f32 1.0, %v1439
  %v1441 = vrcp.pop %v1438
  %v1442 = vmul.f32 1.0, %v1441
  %v1443 = vtanh.pop %v1429
  %v1444 = vtanh.pop %v1430
  %v1445 = vmul.f32 %v1440, 0.0
  %v1446 = vmul.f32 %v1442, 0.0
  %1449 = vrot.lane.b32.xlu0 %v1443, 32
  %v1450 = vpop.permute.xlu0 %1449
  %1451 = vrot.lane.b32.xlu0 %v1444, 32
  %v1452 = vpop.permute.xlu0 %1451
  %v1455 = vmul.f32 %v1440, %v1450
  %v1456 = vmul.f32 %v1442, %v1452
  %1459 = vrot.lane.b32.xlu0 %v1455, 32
  %v1460 = vpop.permute.xlu0 %1459
  %1461 = vrot.lane.b32.xlu0 %v1456, 32
  %v1462 = vpop.permute.xlu0 %1461
  %v1465 = vadd.f32 %v1445, %v1460
  %v1466 = vadd.f32 %v1446, %v1462
  %v1467 = vtanh.pop %v1465
  %v1468 = vtanh.pop %v1466
  %1471 = vrot.lane.b32.xlu0 %v1467, 32
  %v1472 = vpop.permute.xlu0 %1471
  %1473 = vrot.lane.b32.xlu0 %v1468, 32
  %v1474 = vpop.permute.xlu0 %1473
  %v1477 = vmul.f32 %v1440, %v1472
  %v1478 = vmul.f32 %v1442, %v1474
  %v1479 = vld [vmem:[#allocation2 + $0x10] sm:$0xff]
  %v1480 = vld [vmem:[#allocation2 + $0x18] sm:$0xff]
  %v1481 = vpack.c.bf16 %v1478, %v1477
  %1483 = vrot.lane.b32.xlu0 %v1481, 64
  %v1484 = vpop.permute.xlu0 %1483
  %v1486 = vsel %vm260, %v1484, 0
  %1488 = vmatprep.subr.bf16.mxu0 0
  %1489 = vmatpush1.bf16.msra.mxu0 0
  %1490 = vmatprep.subr.bf16.mxu0 0
  %1491 = vmatpush1.bf16.msra.mxu0 0
  %1492 = vmatprep.subr.bf16.mxu0 0
  %1493 = vmatpush1.bf16.msra.mxu0 0
  %1494 = vmatprep.subr.bf16.mxu0 0
  %1495 = vmatpush1.bf16.msra.mxu0 0
  %1496 = vmatprep.subr.bf16.mxu0 0
  %1497 = vmatpush1.bf16.msra.mxu0 0
  %1498 = vmatprep.subr.bf16.mxu0 0
  %1499 = vmatpush1.bf16.msra.mxu0 0
  %1500 = vmatprep.subr.bf16.mxu0 0
  %1501 = vmatpush1.bf16.msra.mxu0 %v1385
  %1502 = vmatprep.subr.bf16.mxu0 0
  %1503 = vmatpush1.bf16.msra.mxu0 %v1384
  %1504 = vmatprep.subr.bf16.mxu0 0
  %1505 = vmatpush2.bf16.msra.mxu0 0
  %1506 = vmatprep.subr.bf16.mxu0 0
  %1507 = vmatpush2.bf16.msra.mxu0 0
  %1508 = vmatprep.subr.bf16.mxu0 0
  %1509 = vmatpush2.bf16.msra.mxu0 0
  %1510 = vmatprep.subr.bf16.mxu0 0
  %1511 = vmatpush2.bf16.msra.mxu0 0
  %1512 = vmatprep.subr.bf16.mxu0 0
  %1513 = vmatpush2.bf16.msra.mxu0 0
  %1514 = vmatprep.subr.bf16.mxu0 0
  %1515 = vmatpush2.bf16.msra.mxu0 0
  %1516 = vmatprep.subr.bf16.mxu0 0
  %1517 = vmatpush2.bf16.msra.mxu0 0
  %1518 = vmatprep.subr.bf16.mxu0 0
  %1519 = vmatpush2.bf16.msra.mxu0 0
  %1520 = vmatprep.mubr.bf16.mxu0 0
  %1521 = vmatmul.mubr.bf16.gmra.mxu0 %v1486
  %v1522 = vpop.f32.mrf.mxu0
  %v1523 = vadd.f32 0.0, %v1522
  %v1524 = vpop.f32.mrf.mxu0
  %v1525 = vpop.f32.mrf.mxu0
  %v1526 = vadd.f32 0.0, %v1525
  %v1527 = vpop.f32.mrf.mxu0
  %1528 = vdwg.mxu0
  %v1529 = vadd.f32 %v1479, %v1523
  %v1530 = vadd.f32 %v1480, %v1526
  %v1531 = vxor.u32 %v1529, 2147483648
  %v1532 = vxor.u32 %v1530, 2147483648
  %v1533 = vmul.f32 %v1531, 1.442695
  %v1534 = vpow.pop %v1533
  %v1535 = vmul.f32 %v1532, 1.442695
  %v1536 = vpow.pop %v1535
  %v1537 = vadd.f32 %v1534, 1.0
  %v1538 = vadd.f32 %v1536, 1.0
  %v1539 = vrcp.pop %v1537
  %v1540 = vmul.f32 1.0, %v1539
  %v1541 = vrcp.pop %v1538
  %v1542 = vmul.f32 1.0, %v1541
  %v1543 = vtanh.pop %v1529
  %v1544 = vtanh.pop %v1530
  %v1545 = vmul.f32 %v1540, %v1465
  %v1546 = vmul.f32 %v1542, %v1466
  %1549 = vrot.lane.b32.xlu0 %v1543, 32
  %v1550 = vpop.permute.xlu0 %1549
  %1551 = vrot.lane.b32.xlu0 %v1544, 32
  %v1552 = vpop.permute.xlu0 %1551
  %v1555 = vmul.f32 %v1540, %v1550
  %v1556 = vmul.f32 %v1542, %v1552
  %1559 = vrot.lane.b32.xlu0 %v1555, 32
  %v1560 = vpop.permute.xlu0 %1559
  %1561 = vrot.lane.b32.xlu0 %v1556, 32
  %v1562 = vpop.permute.xlu0 %1561
  %v1565 = vadd.f32 %v1545, %v1560
  %v1566 = vadd.f32 %v1546, %v1562
  %v1567 = vtanh.pop %v1565
  %v1568 = vtanh.pop %v1566
  %1571 = vrot.lane.b32.xlu0 %v1567, 32
  %v1572 = vpop.permute.xlu0 %1571
  %1573 = vrot.lane.b32.xlu0 %v1568, 32
  %v1574 = vpop.permute.xlu0 %1573
  %v1577 = vmul.f32 %v1540, %v1572
  %v1578 = vmul.f32 %v1542, %v1574
  %v1579 = vld [vmem:[#allocation2 + $0x20] sm:$0xff]
  %v1580 = vld [vmem:[#allocation2 + $0x28] sm:$0xff]
  %v1581 = vpack.c.bf16 %v1578, %v1577
  %1583 = vrot.lane.b32.xlu0 %v1581, 64
  %v1584 = vpop.permute.xlu0 %1583
  %v1586 = vsel %vm260, %v1584, 0
  %1588 = vmatprep.subr.bf16.mxu0 0
  %1589 = vmatpush1.bf16.msra.mxu0 0
  %1590 = vmatprep.subr.bf16.mxu0 0
  %1591 = vmatpush1.bf16.msra.mxu0 0
  %1592 = vmatprep.subr.bf16.mxu0 0
  %1593 = vmatpush1.bf16.msra.mxu0 0
  %1594 = vmatprep.subr.bf16.mxu0 0
  %1595 = vmatpush1.bf16.msra.mxu0 0
  %1596 = vmatprep.subr.bf16.mxu0 0
  %1597 = vmatpush1.bf16.msra.mxu0 0
  %1598 = vmatprep.subr.bf16.mxu0 0
  %1599 = vmatpush1.bf16.msra.mxu0 0
  %1600 = vmatprep.subr.bf16.mxu0 0
  %1601 = vmatpush1.bf16.msra.mxu0 %v1385
  %1602 = vmatprep.subr.bf16.mxu0 0
  %1603 = vmatpush1.bf16.msra.mxu0 %v1384
  %1604 = vmatprep.subr.bf16.mxu0 0
  %1605 = vmatpush2.bf16.msra.mxu0 0
  %1606 = vmatprep.subr.bf16.mxu0 0
  %1607 = vmatpush2.bf16.msra.mxu0 0
  %1608 = vmatprep.subr.bf16.mxu0 0
  %1609 = vmatpush2.bf16.msra.mxu0 0
  %1610 = vmatprep.subr.bf16.mxu0 0
  %1611 = vmatpush2.bf16.msra.mxu0 0
  %1612 = vmatprep.subr.bf16.mxu0 0
  %1613 = vmatpush2.bf16.msra.mxu0 0
  %1614 = vmatprep.subr.bf16.mxu0 0
  %1615 = vmatpush2.bf16.msra.mxu0 0
  %1616 = vmatprep.subr.bf16.mxu0 0
  %1617 = vmatpush2.bf16.msra.mxu0 0
  %1618 = vmatprep.subr.bf16.mxu0 0
  %1619 = vmatpush2.bf16.msra.mxu0 0
  %1620 = vmatprep.mubr.bf16.mxu0 0
  %1621 = vmatmul.mubr.bf16.gmra.mxu0 %v1586
  %v1622 = vpop.f32.mrf.mxu0
  %v1623 = vadd.f32 0.0, %v1622
  %v1624 = vpop.f32.mrf.mxu0
  %v1625 = vpop.f32.mrf.mxu0
  %v1626 = vadd.f32 0.0, %v1625
  %v1627 = vpop.f32.mrf.mxu0
  %1628 = vdwg.mxu0
  %v1629 = vadd.f32 %v1579, %v1623
  %v1630 = vadd.f32 %v1580, %v1626
  %v1631 = vxor.u32 %v1629, 2147483648
  %v1632 = vxor.u32 %v1630, 2147483648
  %v1633 = vmul.f32 %v1631, 1.442695
  %v1634 = vpow.pop %v1633
  %v1635 = vmul.f32 %v1632, 1.442695
  %v1636 = vpow.pop %v1635
  %v1637 = vadd.f32 %v1634, 1.0
  %v1638 = vadd.f32 %v1636, 1.0
  %v1639 = vrcp.pop %v1637
  %v1640 = vmul.f32 1.0, %v1639
  %v1641 = vrcp.pop %v1638
  %v1642 = vmul.f32 1.0, %v1641
  %v1643 = vtanh.pop %v1629
  %v1644 = vtanh.pop %v1630
  %v1645 = vmul.f32 %v1640, %v1565
  %v1646 = vmul.f32 %v1642, %v1566
  %1649 = vrot.lane.b32.xlu0 %v1643, 32
  %v1650 = vpop.permute.xlu0 %1649
  %1651 = vrot.lane.b32.xlu0 %v1644, 32
  %v1652 = vpop.permute.xlu0 %1651
  %v1655 = vmul.f32 %v1640, %v1650
  %v1656 = vmul.f32 %v1642, %v1652
  %1659 = vrot.lane.b32.xlu0 %v1655, 32
  %v1660 = vpop.permute.xlu0 %1659
  %1661 = vrot.lane.b32.xlu0 %v1656, 32
  %v1662 = vpop.permute.xlu0 %1661
  %v1665 = vadd.f32 %v1645, %v1660
  %v1666 = vadd.f32 %v1646, %v1662
  %v1667 = vtanh.pop %v1665
  %v1668 = vtanh.pop %v1666
  %1671 = vrot.lane.b32.xlu0 %v1667, 32
  %v1672 = vpop.permute.xlu0 %1671
  %1673 = vrot.lane.b32.xlu0 %v1668, 32
  %v1674 = vpop.permute.xlu0 %1673
  %v1677 = vmul.f32 %v1640, %v1672
  %v1678 = vmul.f32 %v1642, %v1674
  %v1679 = vld [vmem:[#allocation2 + $0x30] sm:$0xff]
  %v1680 = vld [vmem:[#allocation2 + $0x38] sm:$0xff]
  %v1681 = vpack.c.bf16 %v1678, %v1677
  %1683 = vrot.lane.b32.xlu0 %v1681, 64
  %v1684 = vpop.permute.xlu0 %1683
  %v1686 = vsel %vm260, %v1684, 0
  %1688 = vmatprep.subr.bf16.mxu0 0
  %1689 = vmatpush1.bf16.msra.mxu0 0
  %1690 = vmatprep.subr.bf16.mxu0 0
  %1691 = vmatpush1.bf16.msra.mxu0 0
  %1692 = vmatprep.subr.bf16.mxu0 0
  %1693 = vmatpush1.bf16.msra.mxu0 0
  %1694 = vmatprep.subr.bf16.mxu0 0
  %1695 = vmatpush1.bf16.msra.mxu0 0
  %1696 = vmatprep.subr.bf16.mxu0 0
  %1697 = vmatpush1.bf16.msra.mxu0 0
  %1698 = vmatprep.subr.bf16.mxu0 0
  %1699 = vmatpush1.bf16.msra.mxu0 0
  %1700 = vmatprep.subr.bf16.mxu0 0
  %1701 = vmatpush1.bf16.msra.mxu0 %v1385
  %1702 = vmatprep.subr.bf16.mxu0 0
  %1703 = vmatpush1.bf16.msra.mxu0 %v1384
  %1704 = vmatprep.subr.bf16.mxu0 0
  %1705 = vmatpush2.bf16.msra.mxu0 0
  %1706 = vmatprep.subr.bf16.mxu0 0
  %1707 = vmatpush2.bf16.msra.mxu0 0
  %1708 = vmatprep.subr.bf16.mxu0 0
  %1709 = vmatpush2.bf16.msra.mxu0 0
  %1710 = vmatprep.subr.bf16.mxu0 0
  %1711 = vmatpush2.bf16.msra.mxu0 0
  %1712 = vmatprep.subr.bf16.mxu0 0
  %1713 = vmatpush2.bf16.msra.mxu0 0
  %1714 = vmatprep.subr.bf16.mxu0 0
  %1715 = vmatpush2.bf16.msra.mxu0 0
  %1716 = vmatprep.subr.bf16.mxu0 0
  %1717 = vmatpush2.bf16.msra.mxu0 0
  %1718 = vmatprep.subr.bf16.mxu0 0
  %1719 = vmatpush2.bf16.msra.mxu0 0
  %1720 = vmatprep.mubr.bf16.mxu0 0
  %1721 = vmatmul.mubr.bf16.gmra.mxu0 %v1686
  %v1722 = vpop.f32.mrf.mxu0
  %v1723 = vadd.f32 0.0, %v1722
  %v1724 = vpop.f32.mrf.mxu0
  %v1725 = vpop.f32.mrf.mxu0
  %v1726 = vadd.f32 0.0, %v1725
  %v1727 = vpop.f32.mrf.mxu0
  %1728 = vdwg.mxu0
  %v1729 = vadd.f32 %v1679, %v1723
  %v1730 = vadd.f32 %v1680, %v1726
  %v1731 = vxor.u32 %v1729, 2147483648
  %v1732 = vxor.u32 %v1730, 2147483648
  %v1733 = vmul.f32 %v1731, 1.442695
  %v1734 = vpow.pop %v1733
  %v1735 = vmul.f32 %v1732, 1.442695
  %v1736 = vpow.pop %v1735
  %v1737 = vadd.f32 %v1734, 1.0
  %v1738 = vadd.f32 %v1736, 1.0
  %v1739 = vrcp.pop %v1737
  %v1740 = vmul.f32 1.0, %v1739
  %v1741 = vrcp.pop %v1738
  %v1742 = vmul.f32 1.0, %v1741
  %v1743 = vtanh.pop %v1729
  %v1744 = vtanh.pop %v1730
  %v1745 = vmul.f32 %v1740, %v1665
  %v1746 = vmul.f32 %v1742, %v1666
  %1749 = vrot.lane.b32.xlu0 %v1743, 32
  %v1750 = vpop.permute.xlu0 %1749
  %1751 = vrot.lane.b32.xlu0 %v1744, 32
  %v1752 = vpop.permute.xlu0 %1751
  %v1755 = vmul.f32 %v1740, %v1750
  %v1756 = vmul.f32 %v1742, %v1752
  %1759 = vrot.lane.b32.xlu0 %v1755, 32
  %v1760 = vpop.permute.xlu0 %1759
  %1761 = vrot.lane.b32.xlu0 %v1756, 32
  %v1762 = vpop.permute.xlu0 %1761
  %v1765 = vadd.f32 %v1745, %v1760
  %v1766 = vadd.f32 %v1746, %v1762
  %v1767 = vtanh.pop %v1765
  %v1768 = vtanh.pop %v1766
  %1771 = vrot.lane.b32.xlu0 %v1767, 32
  %v1772 = vpop.permute.xlu0 %1771
  %1773 = vrot.lane.b32.xlu0 %v1768, 32
  %v1774 = vpop.permute.xlu0 %1773
  %v1777 = vmul.f32 %v1740, %v1772
  %v1778 = vmul.f32 %v1742, %v1774
  %v1779 = vld [vmem:[#allocation2 + $0x40] sm:$0xff]
  %v1780 = vld [vmem:[#allocation2 + $0x48] sm:$0xff]
  %v1781 = vpack.c.bf16 %v1778, %v1777
  %1783 = vrot.lane.b32.xlu0 %v1781, 64
  %v1784 = vpop.permute.xlu0 %1783
  %v1786 = vsel %vm260, %v1784, 0
  %1788 = vmatprep.subr.bf16.mxu0 0
  %1789 = vmatpush1.bf16.msra.mxu0 0
  %1790 = vmatprep.subr.bf16.mxu0 0
  %1791 = vmatpush1.bf16.msra.mxu0 0
  %1792 = vmatprep.subr.bf16.mxu0 0
  %1793 = vmatpush1.bf16.msra.mxu0 0
  %1794 = vmatprep.subr.bf16.mxu0 0
  %1795 = vmatpush1.bf16.msra.mxu0 0
  %1796 = vmatprep.subr.bf16.mxu0 0
  %1797 = vmatpush1.bf16.msra.mxu0 0
  %1798 = vmatprep.subr.bf16.mxu0 0
  %1799 = vmatpush1.bf16.msra.mxu0 0
  %1800 = vmatprep.subr.bf16.mxu0 0
  %1801 = vmatpush1.bf16.msra.mxu0 %v1385
  %1802 = vmatprep.subr.bf16.mxu0 0
  %1803 = vmatpush1.bf16.msra.mxu0 %v1384
  %1804 = vmatprep.subr.bf16.mxu0 0
  %1805 = vmatpush2.bf16.msra.mxu0 0
  %1806 = vmatprep.subr.bf16.mxu0 0
  %1807 = vmatpush2.bf16.msra.mxu0 0
  %1808 = vmatprep.subr.bf16.mxu0 0
  %1809 = vmatpush2.bf16.msra.mxu0 0
  %1810 = vmatprep.subr.bf16.mxu0 0
  %1811 = vmatpush2.bf16.msra.mxu0 0
  %1812 = vmatprep.subr.bf16.mxu0 0
  %1813 = vmatpush2.bf16.msra.mxu0 0
  %1814 = vmatprep.subr.bf16.mxu0 0
  %1815 = vmatpush2.bf16.msra.mxu0 0
  %1816 = vmatprep.subr.bf16.mxu0 0
  %1817 = vmatpush2.bf16.msra.mxu0 0
  %1818 = vmatprep.subr.bf16.mxu0 0
  %1819 = vmatpush2.bf16.msra.mxu0 0
  %1820 = vmatprep.mubr.bf16.mxu0 0
  %1821 = vmatmul.mubr.bf16.gmra.mxu0 %v1786
  %v1822 = vpop.f32.mrf.mxu0
  %v1823 = vadd.f32 0.0, %v1822
  %v1824 = vpop.f32.mrf.mxu0
  %v1825 = vpop.f32.mrf.mxu0
  %v1826 = vadd.f32 0.0, %v1825
  %v1827 = vpop.f32.mrf.mxu0
  %1828 = vdwg.mxu0
  %v1829 = vadd.f32 %v1779, %v1823
  %v1830 = vadd.f32 %v1780, %v1826
  %v1831 = vxor.u32 %v1829, 2147483648
  %v1832 = vxor.u32 %v1830, 2147483648
  %v1833 = vmul.f32 %v1831, 1.442695
  %v1834 = vpow.pop %v1833
  %v1835 = vmul.f32 %v1832, 1.442695
  %v1836 = vpow.pop %v1835
  %v1837 = vadd.f32 %v1834, 1.0
  %v1838 = vadd.f32 %v1836, 1.0
  %v1839 = vrcp.pop %v1837
  %v1840 = vmul.f32 1.0, %v1839
  %v1841 = vrcp.pop %v1838
  %v1842 = vmul.f32 1.0, %v1841
  %v1843 = vtanh.pop %v1829
  %v1844 = vtanh.pop %v1830
  %v1845 = vmul.f32 %v1840, %v1765
  %v1846 = vmul.f32 %v1842, %v1766
  %1849 = vrot.lane.b32.xlu0 %v1843, 32
  %v1850 = vpop.permute.xlu0 %1849
  %1851 = vrot.lane.b32.xlu0 %v1844, 32
  %v1852 = vpop.permute.xlu0 %1851
  %v1855 = vmul.f32 %v1840, %v1850
  %v1856 = vmul.f32 %v1842, %v1852
  %1859 = vrot.lane.b32.xlu0 %v1855, 32
  %v1860 = vpop.permute.xlu0 %1859
  %1861 = vrot.lane.b32.xlu0 %v1856, 32
  %v1862 = vpop.permute.xlu0 %1861
  %v1865 = vadd.f32 %v1845, %v1860
  %v1866 = vadd.f32 %v1846, %v1862
  %v1867 = vtanh.pop %v1865
  %v1868 = vtanh.pop %v1866
  %1871 = vrot.lane.b32.xlu0 %v1867, 32
  %v1872 = vpop.permute.xlu0 %1871
  %1873 = vrot.lane.b32.xlu0 %v1868, 32
  %v1874 = vpop.permute.xlu0 %1873
  %v1877 = vmul.f32 %v1840, %v1872
  %v1878 = vmul.f32 %v1842, %v1874
  %v1879 = vld [vmem:[#allocation2 + $0x50] sm:$0xff]
  %v1880 = vld [vmem:[#allocation2 + $0x58] sm:$0xff]
  %v1881 = vpack.c.bf16 %v1878, %v1877
  %1883 = vrot.lane.b32.xlu0 %v1881, 64
  %v1884 = vpop.permute.xlu0 %1883
  %v1886 = vsel %vm260, %v1884, 0
  %1888 = vmatprep.subr.bf16.mxu0 0
  %1889 = vmatpush1.bf16.msra.mxu0 0
  %1890 = vmatprep.subr.bf16.mxu0 0
  %1891 = vmatpush1.bf16.msra.mxu0 0
  %1892 = vmatprep.subr.bf16.mxu0 0
  %1893 = vmatpush1.bf16.msra.mxu0 0
  %1894 = vmatprep.subr.bf16.mxu0 0
  %1895 = vmatpush1.bf16.msra.mxu0 0
  %1896 = vmatprep.subr.bf16.mxu0 0
  %1897 = vmatpush1.bf16.msra.mxu0 0
  %1898 = vmatprep.subr.bf16.mxu0 0
  %1899 = vmatpush1.bf16.msra.mxu0 0
  %1900 = vmatprep.subr.bf16.mxu0 0
  %1901 = vmatpush1.bf16.msra.mxu0 %v1385
  %1902 = vmatprep.subr.bf16.mxu0 0
  %1903 = vmatpush1.bf16.msra.mxu0 %v1384
  %1904 = vmatprep.subr.bf16.mxu0 0
  %1905 = vmatpush2.bf16.msra.mxu0 0
  %1906 = vmatprep.subr.bf16.mxu0 0
  %1907 = vmatpush2.bf16.msra.mxu0 0
  %1908 = vmatprep.subr.bf16.mxu0 0
  %1909 = vmatpush2.bf16.msra.mxu0 0
  %1910 = vmatprep.subr.bf16.mxu0 0
  %1911 = vmatpush2.bf16.msra.mxu0 0
  %1912 = vmatprep.subr.bf16.mxu0 0
  %1913 = vmatpush2.bf16.msra.mxu0 0
  %1914 = vmatprep.subr.bf16.mxu0 0
  %1915 = vmatpush2.bf16.msra.mxu0 0
  %1916 = vmatprep.subr.bf16.mxu0 0
  %1917 = vmatpush2.bf16.msra.mxu0 0
  %1918 = vmatprep.subr.bf16.mxu0 0
  %1919 = vmatpush2.bf16.msra.mxu0 0
  %1920 = vmatprep.mubr.bf16.mxu0 0
  %1921 = vmatmul.mubr.bf16.gmra.mxu0 %v1886
  %v1922 = vpop.f32.mrf.mxu0
  %v1923 = vadd.f32 0.0, %v1922
  %v1924 = vpop.f32.mrf.mxu0
  %v1925 = vpop.f32.mrf.mxu0
  %v1926 = vadd.f32 0.0, %v1925
  %v1927 = vpop.f32.mrf.mxu0
  %1928 = vdwg.mxu0
  %v1929 = vadd.f32 %v1879, %v1923
  %v1930 = vadd.f32 %v1880, %v1926
  %v1931 = vxor.u32 %v1929, 2147483648
  %v1932 = vxor.u32 %v1930, 2147483648
  %v1933 = vmul.f32 %v1931, 1.442695
  %v1934 = vpow.pop %v1933
  %v1935 = vmul.f32 %v1932, 1.442695
  %v1936 = vpow.pop %v1935
  %v1937 = vadd.f32 %v1934, 1.0
  %v1938 = vadd.f32 %v1936, 1.0
  %v1939 = vrcp.pop %v1937
  %v1940 = vmul.f32 1.0, %v1939
  %v1941 = vrcp.pop %v1938
  %v1942 = vmul.f32 1.0, %v1941
  %v1943 = vtanh.pop %v1929
  %v1944 = vtanh.pop %v1930
  %v1945 = vmul.f32 %v1940, %v1865
  %v1946 = vmul.f32 %v1942, %v1866
  %1949 = vrot.lane.b32.xlu0 %v1943, 32
  %v1950 = vpop.permute.xlu0 %1949
  %1951 = vrot.lane.b32.xlu0 %v1944, 32
  %v1952 = vpop.permute.xlu0 %1951
  %v1955 = vmul.f32 %v1940, %v1950
  %v1956 = vmul.f32 %v1942, %v1952
  %1959 = vrot.lane.b32.xlu0 %v1955, 32
  %v1960 = vpop.permute.xlu0 %1959
  %1961 = vrot.lane.b32.xlu0 %v1956, 32
  %v1962 = vpop.permute.xlu0 %1961
  %v1965 = vadd.f32 %v1945, %v1960
  %v1966 = vadd.f32 %v1946, %v1962
  %v1967 = vtanh.pop %v1965
  %v1968 = vtanh.pop %v1966
  %1971 = vrot.lane.b32.xlu0 %v1967, 32
  %v1972 = vpop.permute.xlu0 %1971
  %1973 = vrot.lane.b32.xlu0 %v1968, 32
  %v1974 = vpop.permute.xlu0 %1973
  %v1977 = vmul.f32 %v1940, %v1972
  %v1978 = vmul.f32 %v1942, %v1974
  %v1979 = vld [vmem:[#allocation2 + $0x60] sm:$0xff]
  %v1980 = vld [vmem:[#allocation2 + $0x68] sm:$0xff]
  %v1981 = vpack.c.bf16 %v1978, %v1977
  %1983 = vrot.lane.b32.xlu0 %v1981, 64
  %v1984 = vpop.permute.xlu0 %1983
  %v1986 = vsel %vm260, %v1984, 0
  %1988 = vmatprep.subr.bf16.mxu0 0
  %1989 = vmatpush1.bf16.msra.mxu0 0
  %1990 = vmatprep.subr.bf16.mxu0 0
  %1991 = vmatpush1.bf16.msra.mxu0 0
  %1992 = vmatprep.subr.bf16.mxu0 0
  %1993 = vmatpush1.bf16.msra.mxu0 0
  %1994 = vmatprep.subr.bf16.mxu0 0
  %1995 = vmatpush1.bf16.msra.mxu0 0
  %1996 = vmatprep.subr.bf16.mxu0 0
  %1997 = vmatpush1.bf16.msra.mxu0 0
  %1998 = vmatprep.subr.bf16.mxu0 0
  %1999 = vmatpush1.bf16.msra.mxu0 0
  %2000 = vmatprep.subr.bf16.mxu0 0
  %2001 = vmatpush1.bf16.msra.mxu0 %v1385
  %2002 = vmatprep.subr.bf16.mxu0 0
  %2003 = vmatpush1.bf16.msra.mxu0 %v1384
  %2004 = vmatprep.subr.bf16.mxu0 0
  %2005 = vmatpush2.bf16.msra.mxu0 0
  %2006 = vmatprep.subr.bf16.mxu0 0
  %2007 = vmatpush2.bf16.msra.mxu0 0
  %2008 = vmatprep.subr.bf16.mxu0 0
  %2009 = vmatpush2.bf16.msra.mxu0 0
  %2010 = vmatprep.subr.bf16.mxu0 0
  %2011 = vmatpush2.bf16.msra.mxu0 0
  %2012 = vmatprep.subr.bf16.mxu0 0
  %2013 = vmatpush2.bf16.msra.mxu0 0
  %2014 = vmatprep.subr.bf16.mxu0 0
  %2015 = vmatpush2.bf16.msra.mxu0 0
  %2016 = vmatprep.subr.bf16.mxu0 0
  %2017 = vmatpush2.bf16.msra.mxu0 0
  %2018 = vmatprep.subr.bf16.mxu0 0
  %2019 = vmatpush2.bf16.msra.mxu0 0
  %2020 = vmatprep.mubr.bf16.mxu0 0
  %2021 = vmatmul.mubr.bf16.gmra.mxu0 %v1986
  %v2022 = vpop.f32.mrf.mxu0
  %v2023 = vadd.f32 0.0, %v2022
  %v2024 = vpop.f32.mrf.mxu0
  %v2025 = vpop.f32.mrf.mxu0
  %v2026 = vadd.f32 0.0, %v2025
  %v2027 = vpop.f32.mrf.mxu0
  %2028 = vdwg.mxu0
  %v2029 = vadd.f32 %v1979, %v2023
  %v2030 = vadd.f32 %v1980, %v2026
  %v2031 = vxor.u32 %v2029, 2147483648
  %v2032 = vxor.u32 %v2030, 2147483648
  %v2033 = vmul.f32 %v2031, 1.442695
  %v2034 = vpow.pop %v2033
  %v2035 = vmul.f32 %v2032, 1.442695
  %v2036 = vpow.pop %v2035
  %v2037 = vadd.f32 %v2034, 1.0
  %v2038 = vadd.f32 %v2036, 1.0
  %v2039 = vrcp.pop %v2037
  %v2040 = vmul.f32 1.0, %v2039
  %v2041 = vrcp.pop %v2038
  %v2042 = vmul.f32 1.0, %v2041
  %v2043 = vtanh.pop %v2029
  %v2044 = vtanh.pop %v2030
  %v2045 = vmul.f32 %v2040, %v1965
  %v2046 = vmul.f32 %v2042, %v1966
  %2049 = vrot.lane.b32.xlu0 %v2043, 32
  %v2050 = vpop.permute.xlu0 %2049
  %2051 = vrot.lane.b32.xlu0 %v2044, 32
  %v2052 = vpop.permute.xlu0 %2051
  %v2055 = vmul.f32 %v2040, %v2050
  %v2056 = vmul.f32 %v2042, %v2052
  %2059 = vrot.lane.b32.xlu0 %v2055, 32
  %v2060 = vpop.permute.xlu0 %2059
  %2061 = vrot.lane.b32.xlu0 %v2056, 32
  %v2062 = vpop.permute.xlu0 %2061
  %v2065 = vadd.f32 %v2045, %v2060
  %v2066 = vadd.f32 %v2046, %v2062
  %v2067 = vtanh.pop %v2065
  %v2068 = vtanh.pop %v2066
  %2071 = vrot.lane.b32.xlu0 %v2067, 32
  %v2072 = vpop.permute.xlu0 %2071
  %2073 = vrot.lane.b32.xlu0 %v2068, 32
  %v2074 = vpop.permute.xlu0 %2073
  %v2077 = vmul.f32 %v2040, %v2072
  %v2078 = vmul.f32 %v2042, %v2074
  %v2079 = vld [vmem:[#allocation2 + $0x70] sm:$0xff]
  %v2080 = vld [vmem:[#allocation2 + $0x78] sm:$0xff]
  %v2081 = vpack.c.bf16 %v2078, %v2077
  %2083 = vrot.lane.b32.xlu0 %v2081, 64
  %v2084 = vpop.permute.xlu0 %2083
  %v2086 = vsel %vm260, %v2084, 0
  %2088 = vmatprep.subr.bf16.mxu0 0
  %2089 = vmatpush1.bf16.msra.mxu0 0
  %2090 = vmatprep.subr.bf16.mxu0 0
  %2091 = vmatpush1.bf16.msra.mxu0 0
  %2092 = vmatprep.subr.bf16.mxu0 0
  %2093 = vmatpush1.bf16.msra.mxu0 0
  %2094 = vmatprep.subr.bf16.mxu0 0
  %2095 = vmatpush1.bf16.msra.mxu0 0
  %2096 = vmatprep.subr.bf16.mxu0 0
  %2097 = vmatpush1.bf16.msra.mxu0 0
  %2098 = vmatprep.subr.bf16.mxu0 0
  %2099 = vmatpush1.bf16.msra.mxu0 0
  %2100 = vmatprep.subr.bf16.mxu0 0
  %2101 = vmatpush1.bf16.msra.mxu0 %v1385
  %2102 = vmatprep.subr.bf16.mxu0 0
  %2103 = vmatpush1.bf16.msra.mxu0 %v1384
  %2104 = vmatprep.subr.bf16.mxu0 0
  %2105 = vmatpush2.bf16.msra.mxu0 0
  %2106 = vmatprep.subr.bf16.mxu0 0
  %2107 = vmatpush2.bf16.msra.mxu0 0
  %2108 = vmatprep.subr.bf16.mxu0 0
  %2109 = vmatpush2.bf16.msra.mxu0 0
  %2110 = vmatprep.subr.bf16.mxu0 0
  %2111 = vmatpush2.bf16.msra.mxu0 0
  %2112 = vmatprep.subr.bf16.mxu0 0
  %2113 = vmatpush2.bf16.msra.mxu0 0
  %2114 = vmatprep.subr.bf16.mxu0 0
  %2115 = vmatpush2.bf16.msra.mxu0 0
  %2116 = vmatprep.subr.bf16.mxu0 0
  %2117 = vmatpush2.bf16.msra.mxu0 0
  %2118 = vmatprep.subr.bf16.mxu0 0
  %2119 = vmatpush2.bf16.msra.mxu0 0
  %2120 = vmatprep.mubr.bf16.mxu0 0
  %2121 = vmatmul.mubr.bf16.gmra.mxu0 %v2086
  %v2122 = vpop.f32.mrf.mxu0
  %v2123 = vadd.f32 0.0, %v2122
  %v2124 = vpop.f32.mrf.mxu0
  %v2125 = vpop.f32.mrf.mxu0
  %v2126 = vadd.f32 0.0, %v2125
  %v2127 = vpop.f32.mrf.mxu0
  %2128 = vdwg.mxu0
  %v2129 = vadd.f32 %v2079, %v2123
  %v2130 = vadd.f32 %v2080, %v2126
  %v2131 = vxor.u32 %v2129, 2147483648
  %v2132 = vxor.u32 %v2130, 2147483648
  %v2133 = vmul.f32 %v2131, 1.442695
  %v2134 = vpow.pop %v2133
  %v2135 = vmul.f32 %v2132, 1.442695
  %v2136 = vpow.pop %v2135
  %v2137 = vadd.f32 %v2134, 1.0
  %v2138 = vadd.f32 %v2136, 1.0
  %v2139 = vrcp.pop %v2137
  %v2140 = vmul.f32 1.0, %v2139
  %v2141 = vrcp.pop %v2138
  %v2142 = vmul.f32 1.0, %v2141
  %v2143 = vtanh.pop %v2129
  %v2144 = vtanh.pop %v2130
  %v2145 = vmul.f32 %v2140, %v2065
  %v2146 = vmul.f32 %v2142, %v2066
  %2149 = vrot.lane.b32.xlu0 %v2143, 32
  %v2150 = vpop.permute.xlu0 %2149
  %2151 = vrot.lane.b32.xlu0 %v2144, 32
  %v2152 = vpop.permute.xlu0 %2151
  %v2155 = vmul.f32 %v2140, %v2150
  %v2156 = vmul.f32 %v2142, %v2152
  %2159 = vrot.lane.b32.xlu0 %v2155, 32
  %v2160 = vpop.permute.xlu0 %2159
  %2161 = vrot.lane.b32.xlu0 %v2156, 32
  %v2162 = vpop.permute.xlu0 %2161
  %v2165 = vadd.f32 %v2145, %v2160
  %v2166 = vadd.f32 %v2146, %v2162
  %v2167 = vtanh.pop %v2165
  %v2168 = vtanh.pop %v2166
  %2171 = vrot.lane.b32.xlu0 %v2167, 32
  %v2172 = vpop.permute.xlu0 %2171
  %2173 = vrot.lane.b32.xlu0 %v2168, 32
  %v2174 = vpop.permute.xlu0 %2173
  %v2177 = vmul.f32 %v2140, %v2172
  %v2178 = vmul.f32 %v2142, %v2174
  %v2179 = vpack.c.bf16 %v2178, %v2177
  %v2180 = vld [vmem:[%s7] sm:$0xf]
  %v2181 = vld [vmem:[%s7 + $0x4] sm:$0xf]
  %v2182 = vld [vmem:[%s7 + $0x8] sm:$0xf]
  %v2183 = vld [vmem:[%s7 + $0xc] sm:$0xf]
  %v2184 = vld [vmem:[%s8] sm:$0x1]
  %v2186 = vlaneseq
  %v2187 = vshrl.u32 %v2186, 7
  %v2188 = vsub.s32 0, %v2187
  %v2189 = vrot.slane %v2184, %v2188
  %2192 = vrot.lane.b32.xlu0 %v2179, 64
  %v2193 = vpop.permute.xlu0 %2192
  %v2198 = vunpack.c.l.b16 %v2180
  %v2199 = vunpack.c.l.b16 %v2181
  %v2200 = vunpack.c.l.b16 %v2182
  %v2201 = vunpack.c.l.b16 %v2183
  %v2202 = vpack.c.b16 %v2199, %v2198
  %v2203 = vpack.c.b16 %v2201, %v2200
  %v2207 = vsel %vm260, %v2193, 0
  %2209 = vmatprep.subr.bf16.mxu0 0
  %2210 = vmatpush1.bf16.msra.mxu0 0
  %2211 = vmatprep.subr.bf16.mxu0 0
  %2212 = vmatpush1.bf16.msra.mxu0 0
  %2213 = vmatprep.subr.bf16.mxu0 0
  %2214 = vmatpush1.bf16.msra.mxu0 0
  %2215 = vmatprep.subr.bf16.mxu0 0
  %2216 = vmatpush1.bf16.msra.mxu0 0
  %2217 = vmatprep.subr.bf16.mxu0 0
  %2218 = vmatpush1.bf16.msra.mxu0 0
  %2219 = vmatprep.subr.bf16.mxu0 0
  %2220 = vmatpush1.bf16.msra.mxu0 0
  %2221 = vmatprep.subr.bf16.mxu0 0
  %2222 = vmatpush1.bf16.msra.mxu0 %v2203
  %2223 = vmatprep.subr.bf16.mxu0 0
  %2224 = vmatpush1.bf16.msra.mxu0 %v2202
  %2225 = vmatprep.subr.bf16.mxu0 0
  %2226 = vmatpush2.bf16.msra.mxu0 0
  %2227 = vmatprep.subr.bf16.mxu0 0
  %2228 = vmatpush2.bf16.msra.mxu0 0
  %2229 = vmatprep.subr.bf16.mxu0 0
  %2230 = vmatpush2.bf16.msra.mxu0 0
  %2231 = vmatprep.subr.bf16.mxu0 0
  %2232 = vmatpush2.bf16.msra.mxu0 0
  %2233 = vmatprep.subr.bf16.mxu0 0
  %2234 = vmatpush2.bf16.msra.mxu0 0
  %2235 = vmatprep.subr.bf16.mxu0 0
  %2236 = vmatpush2.bf16.msra.mxu0 0
  %2237 = vmatprep.subr.bf16.mxu0 0
  %2238 = vmatpush2.bf16.msra.mxu0 0
  %2239 = vmatprep.subr.bf16.mxu0 0
  %2240 = vmatpush2.bf16.msra.mxu0 0
  %2241 = vmatprep.mubr.bf16.mxu0 0
  %2242 = vmatmul.mubr.bf16.gmra.mxu0 %v2207
  %v2243 = vpop.f32.mrf.mxu0
  %v2244 = vadd.f32 %v2189, %v2243
  %v2245 = vpop.f32.mrf.mxu0
  %v2246 = vpop.f32.mrf.mxu0
  %v2247 = vadd.f32 %v2189, %v2246
  %v2248 = vpop.f32.mrf.mxu0
  %2249 = vdwg.mxu0
  %vm2250 = vcmask 64512
  %2251 = vst.msk [vmem:[%s9] sm:$0xff] %vm2250, %v2244
  %2252 = vst.msk [vmem:[%s9 + $0x8] sm:$0xff] %vm2250, %v2247
  // Predicated region
  $region38: #{tpu_custom_call.1} parent=0 // pred_check
    _
  $region39: #{tpu_custom_call.1} parent=0 // pred_check_branch
    %2254 = sbr.rel (0) target = $region41
  $region40: #{tpu_custom_call.1} parent=0 // pred_region
    _
  $region41: #{tpu_custom_call.1} parent=0 // pred_fallthru
    _
  // Predicated region
  $region42: #{tpu_custom_call.1} parent=0 // pred_check
    _
  $region43: #{tpu_custom_call.1} parent=0 // pred_check_branch
    %2256 = sbr.rel (0) target = $region45
  $region44: #{tpu_custom_call.1} parent=0 // pred_region
    _
  $region45: #{tpu_custom_call.1} parent=0 // pred_fallthru
    _

</llo_original>
